<compile_context>
chip_gen: v5e
topology: v5e:2x2
jax: 0.10.0
libtpu: 0.0.40
codegen_flags: <defaults>
</compile_context>

<pallas_src>
import jax
import jax.numpy as jnp
from jax import lax
from jax.experimental import pallas as pl
from jax.experimental.pallas import tpu as pltpu


# ----------------------------- Pallas kernel --------------------------------
def _pos_tagger_kernel(x_ref, wih_ref, whh_ref, b_ref, wfc_ref, bfc_ref,
                       y_ref, gx_sc, hall_sc, h_sc, c_sc):
    """Fused: batched input GEMM -> LSTM recurrence -> batched FC GEMM."""
    Bp, H = h_sc.shape                 # padded batch, hidden size
    TB = gx_sc.shape[0]                # T * Bp
    T = TB // Bp

    # (1) Hoisted input projection + fused bias: one lane-dense batched GEMM.
    gx_sc[...] = (jnp.dot(x_ref[...], wih_ref[...],
                          preferred_element_type=jnp.float32) + b_ref[...])

    # (2) Recurrence: per step only h_prev @ W_hh + precomputed gates_x[t].
    h_sc[...] = jnp.zeros_like(h_sc)
    c_sc[...] = jnp.zeros_like(c_sc)

    def step(t, carry):
        row = pl.multiple_of(t * Bp, Bp)
        h_prev = h_sc[...]
        c_prev = c_sc[...]
        gates = gx_sc[pl.ds(row, Bp), :] + jnp.dot(
            h_prev, whh_ref[...], preferred_element_type=jnp.float32)
        # PyTorch LSTM gate order [i, f, g, o]; 4H == 128 lanes here so the
        # gate block is a single vreg row per sublane.
        i_g = jax.nn.sigmoid(gates[:, 0 * H:1 * H])
        f_g = jax.nn.sigmoid(gates[:, 1 * H:2 * H])
        g_g = jnp.tanh(gates[:, 2 * H:3 * H])
        o_g = jax.nn.sigmoid(gates[:, 3 * H:4 * H])
        c_new = f_g * c_prev + i_g * g_g
        h_new = o_g * jnp.tanh(c_new)
        h_sc[...] = h_new
        c_sc[...] = c_new
        hall_sc[pl.ds(row, Bp), :] = h_new
        return carry

    lax.fori_loop(0, T, step, 0, unroll=True)

    # (3) Hoisted FC projection: one batched lane-dense GEMM + unmasked store.
    y_ref[...] = (jnp.dot(hall_sc[...], wfc_ref[...],
                          preferred_element_type=jnp.float32)
                  + bfc_ref[...]).astype(y_ref.dtype)


def _round_up(x, m):
    return ((x + m - 1) // m) * m


def pos_tagger_fwd_pallas(x_emb, w_ih, w_hh, b, w_fc, b_fc):
    """x_emb: (T, B, E) float32 -> (T, B, O) float32."""
    T, B, E = x_emb.shape
    H4 = w_ih.shape[1]
    H = H4 // 4
    O = w_fc.shape[1]

    Bp = _round_up(max(B, 8), 8)       # fill sublanes
    Op = _round_up(max(O, 128), 128)   # lane-dense output stores

    # Pad batch and output lanes with zeros (sliced off after the call).
    x_p = jnp.zeros((T, Bp, E), jnp.float32).at[:, :B, :].set(x_emb)
    x_flat = x_p.reshape(T * Bp, E)
    w_fc_p = jnp.zeros((H, Op), jnp.float32).at[:, :O].set(w_fc)
    b_fc_p = jnp.zeros((1, Op), jnp.float32).at[:, :O].set(b_fc)

    y_flat = pl.pallas_call(
        _pos_tagger_kernel,
        out_shape=jax.ShapeDtypeStruct((T * Bp, Op), jnp.float32),
        grid_spec=pltpu.PrefetchScalarGridSpec(
            num_scalar_prefetch=0,
            grid=(1,),                                    # single invocation
            in_specs=[
                pl.BlockSpec((T * Bp, E), lambda i: (0, 0)),   # all x rows
                pl.BlockSpec((E, H4), lambda i: (0, 0)),       # W_ih
                pl.BlockSpec((H, H4), lambda i: (0, 0)),       # W_hh
                pl.BlockSpec((1, H4), lambda i: (0, 0)),       # b (ih+hh)
                pl.BlockSpec((H, Op), lambda i: (0, 0)),       # W_fc (padded)
                pl.BlockSpec((1, Op), lambda i: (0, 0)),       # b_fc (padded)
            ],
            out_specs=pl.BlockSpec((T * Bp, Op), lambda i: (0, 0)),
            scratch_shapes=[
                pltpu.VMEM((T * Bp, H4), jnp.float32),   # gates_x (hoisted GEMM)
                pltpu.VMEM((T * Bp, H), jnp.float32),    # all h_t (for FC GEMM)
                pltpu.VMEM((Bp, H), jnp.float32),        # h state
                pltpu.VMEM((Bp, H), jnp.float32),        # c state
            ],
        ),
        compiler_params=pltpu.CompilerParams(
            dimension_semantics=("arbitrary",)),
    )(x_flat, w_ih, w_hh, b, w_fc_p, b_fc_p)

    return y_flat.reshape(T, Bp, Op)[:, :B, :O]


# ----------------------------- module wrapper --------------------------------
class PosTaggerPallas:
    """Deterministically-initialized equivalent of PosTagger.forward."""

    def __init__(self, num_inputs, embedding_dim, num_hiddens, num_outputs,
                 padding_idx, sigma=0.01, seed=0):
        self.padding_idx = padding_idx
        k = jax.random.PRNGKey(seed)
        ks = jax.random.split(k, 7)
        E, H, O = embedding_dim, num_hiddens, num_outputs

        emb = sigma * jax.random.normal(ks[0], (num_inputs, E), jnp.float32)
        # nn.Embedding zeros the padding_idx row
        self.embedding = emb.at[padding_idx].set(0.0)

        self.w_ih = sigma * jax.random.normal(ks[1], (E, 4 * H), jnp.float32)
        self.w_hh = sigma * jax.random.normal(ks[2], (H, 4 * H), jnp.float32)
        b_ih = sigma * jax.random.normal(ks[3], (4 * H,), jnp.float32)
        b_hh = sigma * jax.random.normal(ks[4], (4 * H,), jnp.float32)
        self.b = (b_ih + b_hh).reshape(1, 4 * H)

        self.w_fc = sigma * jax.random.normal(ks[5], (H, O), jnp.float32)
        self.b_fc = sigma * jax.random.normal(ks[6], (1, O), jnp.float32)

    def __call__(self, X):
        """X: int32 token ids, (num_steps, batch) -> (num_steps, batch, O)."""
        embeds = self.embedding[X]              # gather glue in plain JAX
        return pos_tagger_fwd_pallas(embeds, self.w_ih, self.w_hh, self.b,
                                     self.w_fc, self.b_fc)

    # pure-JAX reference (lax.scan) for correctness checking
    def reference(self, X):
        embeds = self.embedding[X]
        H = self.w_hh.shape[0]

        def step(carry, x_t):
            h, c = carry
            gates = x_t @ self.w_ih + h @ self.w_hh + self.b
            i = jax.nn.sigmoid(gates[:, 0 * H:1 * H])
            f = jax.nn.sigmoid(gates[:, 1 * H:2 * H])
            g = jnp.tanh(gates[:, 2 * H:3 * H])
            o = jax.nn.sigmoid(gates[:, 3 * H:4 * H])
            c = f * c + i * g
            h = o * jnp.tanh(c)
            return (h, c), h @ self.w_fc + self.b_fc

        B = X.shape[1]
        init = (jnp.zeros((B, H), jnp.float32), jnp.zeros((B, H), jnp.float32))
        _, ys = jax.lax.scan(step, init, embeds)
        return ys


if __name__ == "__main__":
    # small shapes consistent with the module
    VOCAB, EMB, HID, OUT, PAD = 50, 32, 32, 16, 0
    T, B = 8, 2

    model = PosTaggerPallas(num_inputs=VOCAB, embedding_dim=EMB,
                            num_hiddens=HID, num_outputs=OUT,
                            padding_idx=PAD, sigma=0.01, seed=0)

    key = jax.random.PRNGKey(0)
    X = jax.random.randint(key, (T, B), minval=0, maxval=VOCAB, dtype=jnp.int32)

    y = model(X)
    jax.block_until_ready(y)

    y_ref = model.reference(X)
    assert y.shape == (T, B, OUT)
    assert jnp.allclose(y, y_ref, atol=1e-5, rtol=1e-5), "mismatch vs JAX reference"

    print("KERNEL_OK")
</pallas_src>

<mosaic_0001>
module attributes {stable_mosaic.version = 11 : i64} {
  func.func @_pos_tagger_kernel(%arg0: i32, %arg1: memref<64x32xf32, #tpu.memory_space<vmem>>, %arg2: memref<32x128xf32, #tpu.memory_space<vmem>>, %arg3: memref<32x128xf32, #tpu.memory_space<vmem>>, %arg4: memref<1x128xf32, #tpu.memory_space<vmem>>, %arg5: memref<32x128xf32, #tpu.memory_space<vmem>>, %arg6: memref<1x128xf32, #tpu.memory_space<vmem>>, %arg7: memref<64x128xf32, #tpu.memory_space<vmem>>, %arg8: memref<64x128xf32, #tpu.memory_space<vmem>>, %arg9: memref<64x32xf32, #tpu.memory_space<vmem>>, %arg10: memref<8x32xf32, #tpu.memory_space<vmem>>, %arg11: memref<8x32xf32, #tpu.memory_space<vmem>>) attributes {dimension_semantics = [#tpu.dimension_semantics<arbitrary>], iteration_bounds = array<i64: 1>, scalar_prefetch = 0 : i64, scratch_operands = 4 : i64, tpu.core_type = #tpu.core_type<tc>, window_params = [{pipeline_mode = #tpu.pipeline_mode<synchronous>, transform_indices = @transform_0, window_bounds = array<i64: 64, 32>}, {pipeline_mode = #tpu.pipeline_mode<synchronous>, transform_indices = @transform_1, window_bounds = array<i64: 32, 128>}, {pipeline_mode = #tpu.pipeline_mode<synchronous>, transform_indices = @transform_2, window_bounds = array<i64: 32, 128>}, {pipeline_mode = #tpu.pipeline_mode<synchronous>, transform_indices = @transform_3, window_bounds = array<i64: 1, 128>}, {pipeline_mode = #tpu.pipeline_mode<synchronous>, transform_indices = @transform_4, window_bounds = array<i64: 32, 128>}, {pipeline_mode = #tpu.pipeline_mode<synchronous>, transform_indices = @transform_5, window_bounds = array<i64: 1, 128>}, {pipeline_mode = #tpu.pipeline_mode<synchronous>, transform_indices = @transform_6, window_bounds = array<i64: 64, 128>}]} {
    %c0 = arith.constant 0 : index
    %c0_0 = arith.constant 0 : index
    %0 = vector.load %arg1[%c0, %c0_0] : memref<64x32xf32, #tpu.memory_space<vmem>>, vector<64x32xf32>
    %c0_1 = arith.constant 0 : index
    %c0_2 = arith.constant 0 : index
    %1 = vector.load %arg2[%c0_1, %c0_2] : memref<32x128xf32, #tpu.memory_space<vmem>>, vector<32x128xf32>
    %cst = arith.constant dense<0.000000e+00> : vector<64x128xf32>
    %2 = tpu.matmul %0, %1, %cst {dimension_numbers = #tpu.dot_dimension_numbers<[1], [0], [0], [1], [0, 0, 1, 1], [], []>} : vector<64x32xf32>, vector<32x128xf32>, vector<64x128xf32> -> vector<64x128xf32>
    %c0_3 = arith.constant 0 : index
    %c0_4 = arith.constant 0 : index
    %3 = vector.load %arg4[%c0_3, %c0_4] : memref<1x128xf32, #tpu.memory_space<vmem>>, vector<1x128xf32>
    %4 = vector.broadcast %3 : vector<1x128xf32> to vector<64x128xf32>
    %5 = arith.addf %2, %4 : vector<64x128xf32>
    %c0_5 = arith.constant 0 : index
    %c0_6 = arith.constant 0 : index
    %6 = vector.load %arg8[%c0_5, %c0_6] : memref<64x128xf32, #tpu.memory_space<vmem>>, vector<64x128xf32>
    tpu.vector_store %arg8[%c0_5, %c0_6], %5 {strides = array<i32>} : memref<64x128xf32, #tpu.memory_space<vmem>>, vector<64x128xf32>,
    %cst_7 = arith.constant 0.000000e+00 : f32
    %7 = vector.broadcast %cst_7 : f32 to vector<8x32xf32>
    %c0_8 = arith.constant 0 : index
    %c0_9 = arith.constant 0 : index
    %8 = vector.load %arg10[%c0_8, %c0_9] : memref<8x32xf32, #tpu.memory_space<vmem>>, vector<8x32xf32>
    tpu.vector_store %arg10[%c0_8, %c0_9], %7 {strides = array<i32>} : memref<8x32xf32, #tpu.memory_space<vmem>>, vector<8x32xf32>,
    %cst_10 = arith.constant 0.000000e+00 : f32
    %9 = vector.broadcast %cst_10 : f32 to vector<8x32xf32>
    %c0_11 = arith.constant 0 : index
    %c0_12 = arith.constant 0 : index
    %10 = vector.load %arg11[%c0_11, %c0_12] : memref<8x32xf32, #tpu.memory_space<vmem>>, vector<8x32xf32>
    tpu.vector_store %arg11[%c0_11, %c0_12], %9 {strides = array<i32>} : memref<8x32xf32, #tpu.memory_space<vmem>>, vector<8x32xf32>,
    %c0_i32 = arith.constant 0 : i32
    %c8_i32 = arith.constant 8 : i32
    %11 = arith.muli %c0_i32, %c8_i32 : i32
    %12 = tpu.assume_multiple %11, 8 : i32
    %c0_13 = arith.constant 0 : index
    %c0_14 = arith.constant 0 : index
    %13 = vector.load %arg10[%c0_13, %c0_14] : memref<8x32xf32, #tpu.memory_space<vmem>>, vector<8x32xf32>
    %c0_15 = arith.constant 0 : index
    %c0_16 = arith.constant 0 : index
    %14 = vector.load %arg11[%c0_15, %c0_16] : memref<8x32xf32, #tpu.memory_space<vmem>>, vector<8x32xf32>
    %15 = arith.index_cast %12 : i32 to index
    %c0_17 = arith.constant 0 : index
    %16 = vector.load %arg8[%15, %c0_17] : memref<64x128xf32, #tpu.memory_space<vmem>>, vector<8x128xf32>
    %c0_18 = arith.constant 0 : index
    %c0_19 = arith.constant 0 : index
    %17 = vector.load %arg3[%c0_18, %c0_19] : memref<32x128xf32, #tpu.memory_space<vmem>>, vector<32x128xf32>
    %cst_20 = arith.constant dense<0.000000e+00> : vector<8x128xf32>
    %18 = tpu.matmul %13, %17, %cst_20 {dimension_numbers = #tpu.dot_dimension_numbers<[1], [0], [0], [1], [0, 0, 1, 1], [], []>} : vector<8x32xf32>, vector<32x128xf32>, vector<8x128xf32> -> vector<8x128xf32>
    %19 = arith.addf %16, %18 : vector<8x128xf32>
    %20 = vector.extract_strided_slice %19 {offsets = [0, 0], sizes = [8, 32], strides = [1, 1]} : vector<8x128xf32> to vector<8x32xf32>
    %21 = arith.negf %20 : vector<8x32xf32>
    %22 = math.exp %21 : vector<8x32xf32>
    %cst_21 = arith.constant 1.000000e+00 : f32
    %23 = vector.broadcast %cst_21 : f32 to vector<8x32xf32>
    %24 = arith.addf %23, %22 : vector<8x32xf32>
    %25 = arith.divf %23, %24 : vector<8x32xf32>
    %26 = vector.extract_strided_slice %19 {offsets = [0, 32], sizes = [8, 32], strides = [1, 1]} : vector<8x128xf32> to vector<8x32xf32>
    %27 = arith.negf %26 : vector<8x32xf32>
    %28 = math.exp %27 : vector<8x32xf32>
    %cst_22 = arith.constant 1.000000e+00 : f32
    %29 = vector.broadcast %cst_22 : f32 to vector<8x32xf32>
    %30 = arith.addf %29, %28 : vector<8x32xf32>
    %31 = arith.divf %29, %30 : vector<8x32xf32>
    %32 = vector.extract_strided_slice %19 {offsets = [0, 64], sizes = [8, 32], strides = [1, 1]} : vector<8x128xf32> to vector<8x32xf32>
    %33 = math.tanh %32 : vector<8x32xf32>
    %34 = vector.extract_strided_slice %19 {offsets = [0, 96], sizes = [8, 32], strides = [1, 1]} : vector<8x128xf32> to vector<8x32xf32>
    %35 = arith.negf %34 : vector<8x32xf32>
    %36 = math.exp %35 : vector<8x32xf32>
    %cst_23 = arith.constant 1.000000e+00 : f32
    %37 = vector.broadcast %cst_23 : f32 to vector<8x32xf32>
    %38 = arith.addf %37, %36 : vector<8x32xf32>
    %39 = arith.divf %37, %38 : vector<8x32xf32>
    %40 = arith.mulf %31, %14 : vector<8x32xf32>
    %41 = arith.mulf %25, %33 : vector<8x32xf32>
    %42 = arith.addf %40, %41 : vector<8x32xf32>
    %43 = math.tanh %42 : vector<8x32xf32>
    %44 = arith.mulf %39, %43 : vector<8x32xf32>
    %c0_24 = arith.constant 0 : index
    %c0_25 = arith.constant 0 : index
    %45 = vector.load %arg10[%c0_24, %c0_25] : memref<8x32xf32, #tpu.memory_space<vmem>>, vector<8x32xf32>
    tpu.vector_store %arg10[%c0_24, %c0_25], %44 {strides = array<i32>} : memref<8x32xf32, #tpu.memory_space<vmem>>, vector<8x32xf32>,
    %c0_26 = arith.constant 0 : index
    %c0_27 = arith.constant 0 : index
    %46 = vector.load %arg11[%c0_26, %c0_27] : memref<8x32xf32, #tpu.memory_space<vmem>>, vector<8x32xf32>
    tpu.vector_store %arg11[%c0_26, %c0_27], %42 {strides = array<i32>} : memref<8x32xf32, #tpu.memory_space<vmem>>, vector<8x32xf32>,
    %47 = arith.index_cast %12 : i32 to index
    %c0_28 = arith.constant 0 : index
    %48 = vector.load %arg9[%47, %c0_28] : memref<64x32xf32, #tpu.memory_space<vmem>>, vector<8x32xf32>
    tpu.vector_store %arg9[%47, %c0_28], %44 {strides = array<i32>} : memref<64x32xf32, #tpu.memory_space<vmem>>, vector<8x32xf32>,
    %c1_i32 = arith.constant 1 : i32
    %c8_i32_29 = arith.constant 8 : i32
    %49 = arith.muli %c1_i32, %c8_i32_29 : i32
    %50 = tpu.assume_multiple %49, 8 : i32
    %c0_30 = arith.constant 0 : index
    %c0_31 = arith.constant 0 : index
    %51 = vector.load %arg10[%c0_30, %c0_31] : memref<8x32xf32, #tpu.memory_space<vmem>>, vector<8x32xf32>
    %c0_32 = arith.constant 0 : index
    %c0_33 = arith.constant 0 : index
    %52 = vector.load %arg11[%c0_32, %c0_33] : memref<8x32xf32, #tpu.memory_space<vmem>>, vector<8x32xf32>
    %53 = arith.index_cast %50 : i32 to index
    %c0_34 = arith.constant 0 : index
    %54 = vector.load %arg8[%53, %c0_34] : memref<64x128xf32, #tpu.memory_space<vmem>>, vector<8x128xf32>
    %c0_35 = arith.constant 0 : index
    %c0_36 = arith.constant 0 : index
    %55 = vector.load %arg3[%c0_35, %c0_36] : memref<32x128xf32, #tpu.memory_space<vmem>>, vector<32x128xf32>
    %cst_37 = arith.constant dense<0.000000e+00> : vector<8x128xf32>
    %56 = tpu.matmul %51, %55, %cst_37 {dimension_numbers = #tpu.dot_dimension_numbers<[1], [0], [0], [1], [0, 0, 1, 1], [], []>} : vector<8x32xf32>, vector<32x128xf32>, vector<8x128xf32> -> vector<8x128xf32>
    %57 = arith.addf %54, %56 : vector<8x128xf32>
    %58 = vector.extract_strided_slice %57 {offsets = [0, 0], sizes = [8, 32], strides = [1, 1]} : vector<8x128xf32> to vector<8x32xf32>
    %59 = arith.negf %58 : vector<8x32xf32>
    %60 = math.exp %59 : vector<8x32xf32>
    %cst_38 = arith.constant 1.000000e+00 : f32
    %61 = vector.broadcast %cst_38 : f32 to vector<8x32xf32>
    %62 = arith.addf %61, %60 : vector<8x32xf32>
    %63 = arith.divf %61, %62 : vector<8x32xf32>
    %64 = vector.extract_strided_slice %57 {offsets = [0, 32], sizes = [8, 32], strides = [1, 1]} : vector<8x128xf32> to vector<8x32xf32>
    %65 = arith.negf %64 : vector<8x32xf32>
    %66 = math.exp %65 : vector<8x32xf32>
    %cst_39 = arith.constant 1.000000e+00 : f32
    %67 = vector.broadcast %cst_39 : f32 to vector<8x32xf32>
    %68 = arith.addf %67, %66 : vector<8x32xf32>
    %69 = arith.divf %67, %68 : vector<8x32xf32>
    %70 = vector.extract_strided_slice %57 {offsets = [0, 64], sizes = [8, 32], strides = [1, 1]} : vector<8x128xf32> to vector<8x32xf32>
    %71 = math.tanh %70 : vector<8x32xf32>
    %72 = vector.extract_strided_slice %57 {offsets = [0, 96], sizes = [8, 32], strides = [1, 1]} : vector<8x128xf32> to vector<8x32xf32>
    %73 = arith.negf %72 : vector<8x32xf32>
    %74 = math.exp %73 : vector<8x32xf32>
    %cst_40 = arith.constant 1.000000e+00 : f32
    %75 = vector.broadcast %cst_40 : f32 to vector<8x32xf32>
    %76 = arith.addf %75, %74 : vector<8x32xf32>
    %77 = arith.divf %75, %76 : vector<8x32xf32>
    %78 = arith.mulf %69, %52 : vector<8x32xf32>
    %79 = arith.mulf %63, %71 : vector<8x32xf32>
    %80 = arith.addf %78, %79 : vector<8x32xf32>
    %81 = math.tanh %80 : vector<8x32xf32>
    %82 = arith.mulf %77, %81 : vector<8x32xf32>
    %c0_41 = arith.constant 0 : index
    %c0_42 = arith.constant 0 : index
    %83 = vector.load %arg10[%c0_41, %c0_42] : memref<8x32xf32, #tpu.memory_space<vmem>>, vector<8x32xf32>
    tpu.vector_store %arg10[%c0_41, %c0_42], %82 {strides = array<i32>} : memref<8x32xf32, #tpu.memory_space<vmem>>, vector<8x32xf32>,
    %c0_43 = arith.constant 0 : index
    %c0_44 = arith.constant 0 : index
    %84 = vector.load %arg11[%c0_43, %c0_44] : memref<8x32xf32, #tpu.memory_space<vmem>>, vector<8x32xf32>
    tpu.vector_store %arg11[%c0_43, %c0_44], %80 {strides = array<i32>} : memref<8x32xf32, #tpu.memory_space<vmem>>, vector<8x32xf32>,
    %85 = arith.index_cast %50 : i32 to index
    %c0_45 = arith.constant 0 : index
    %86 = vector.load %arg9[%85, %c0_45] : memref<64x32xf32, #tpu.memory_space<vmem>>, vector<8x32xf32>
    tpu.vector_store %arg9[%85, %c0_45], %82 {strides = array<i32>} : memref<64x32xf32, #tpu.memory_space<vmem>>, vector<8x32xf32>,
    %c2_i32 = arith.constant 2 : i32
    %c8_i32_46 = arith.constant 8 : i32
    %87 = arith.muli %c2_i32, %c8_i32_46 : i32
    %88 = tpu.assume_multiple %87, 8 : i32
    %c0_47 = arith.constant 0 : index
    %c0_48 = arith.constant 0 : index
    %89 = vector.load %arg10[%c0_47, %c0_48] : memref<8x32xf32, #tpu.memory_space<vmem>>, vector<8x32xf32>
    %c0_49 = arith.constant 0 : index
    %c0_50 = arith.constant 0 : index
    %90 = vector.load %arg11[%c0_49, %c0_50] : memref<8x32xf32, #tpu.memory_space<vmem>>, vector<8x32xf32>
    %91 = arith.index_cast %88 : i32 to index
    %c0_51 = arith.constant 0 : index
    %92 = vector.load %arg8[%91, %c0_51] : memref<64x128xf32, #tpu.memory_space<vmem>>, vector<8x128xf32>
    %c0_52 = arith.constant 0 : index
    %c0_53 = arith.constant 0 : index
    %93 = vector.load %arg3[%c0_52, %c0_53] : memref<32x128xf32, #tpu.memory_space<vmem>>, vector<32x128xf32>
    %cst_54 = arith.constant dense<0.000000e+00> : vector<8x128xf32>
    %94 = tpu.matmul %89, %93, %cst_54 {dimension_numbers = #tpu.dot_dimension_numbers<[1], [0], [0], [1], [0, 0, 1, 1], [], []>} : vector<8x32xf32>, vector<32x128xf32>, vector<8x128xf32> -> vector<8x128xf32>
    %95 = arith.addf %92, %94 : vector<8x128xf32>
    %96 = vector.extract_strided_slice %95 {offsets = [0, 0], sizes = [8, 32], strides = [1, 1]} : vector<8x128xf32> to vector<8x32xf32>
    %97 = arith.negf %96 : vector<8x32xf32>
    %98 = math.exp %97 : vector<8x32xf32>
    %cst_55 = arith.constant 1.000000e+00 : f32
    %99 = vector.broadcast %cst_55 : f32 to vector<8x32xf32>
    %100 = arith.addf %99, %98 : vector<8x32xf32>
    %101 = arith.divf %99, %100 : vector<8x32xf32>
    %102 = vector.extract_strided_slice %95 {offsets = [0, 32], sizes = [8, 32], strides = [1, 1]} : vector<8x128xf32> to vector<8x32xf32>
    %103 = arith.negf %102 : vector<8x32xf32>
    %104 = math.exp %103 : vector<8x32xf32>
    %cst_56 = arith.constant 1.000000e+00 : f32
    %105 = vector.broadcast %cst_56 : f32 to vector<8x32xf32>
    %106 = arith.addf %105, %104 : vector<8x32xf32>
    %107 = arith.divf %105, %106 : vector<8x32xf32>
    %108 = vector.extract_strided_slice %95 {offsets = [0, 64], sizes = [8, 32], strides = [1, 1]} : vector<8x128xf32> to vector<8x32xf32>
    %109 = math.tanh %108 : vector<8x32xf32>
    %110 = vector.extract_strided_slice %95 {offsets = [0, 96], sizes = [8, 32], strides = [1, 1]} : vector<8x128xf32> to vector<8x32xf32>
    %111 = arith.negf %110 : vector<8x32xf32>
    %112 = math.exp %111 : vector<8x32xf32>
    %cst_57 = arith.constant 1.000000e+00 : f32
    %113 = vector.broadcast %cst_57 : f32 to vector<8x32xf32>
    %114 = arith.addf %113, %112 : vector<8x32xf32>
    %115 = arith.divf %113, %114 : vector<8x32xf32>
    %116 = arith.mulf %107, %90 : vector<8x32xf32>
    %117 = arith.mulf %101, %109 : vector<8x32xf32>
    %118 = arith.addf %116, %117 : vector<8x32xf32>
    %119 = math.tanh %118 : vector<8x32xf32>
    %120 = arith.mulf %115, %119 : vector<8x32xf32>
    %c0_58 = arith.constant 0 : index
    %c0_59 = arith.constant 0 : index
    %121 = vector.load %arg10[%c0_58, %c0_59] : memref<8x32xf32, #tpu.memory_space<vmem>>, vector<8x32xf32>
    tpu.vector_store %arg10[%c0_58, %c0_59], %120 {strides = array<i32>} : memref<8x32xf32, #tpu.memory_space<vmem>>, vector<8x32xf32>,
    %c0_60 = arith.constant 0 : index
    %c0_61 = arith.constant 0 : index
    %122 = vector.load %arg11[%c0_60, %c0_61] : memref<8x32xf32, #tpu.memory_space<vmem>>, vector<8x32xf32>
    tpu.vector_store %arg11[%c0_60, %c0_61], %118 {strides = array<i32>} : memref<8x32xf32, #tpu.memory_space<vmem>>, vector<8x32xf32>,
    %123 = arith.index_cast %88 : i32 to index
    %c0_62 = arith.constant 0 : index
    %124 = vector.load %arg9[%123, %c0_62] : memref<64x32xf32, #tpu.memory_space<vmem>>, vector<8x32xf32>
    tpu.vector_store %arg9[%123, %c0_62], %120 {strides = array<i32>} : memref<64x32xf32, #tpu.memory_space<vmem>>, vector<8x32xf32>,
    %c3_i32 = arith.constant 3 : i32
    %c8_i32_63 = arith.constant 8 : i32
    %125 = arith.muli %c3_i32, %c8_i32_63 : i32
    %126 = tpu.assume_multiple %125, 8 : i32
    %c0_64 = arith.constant 0 : index
    %c0_65 = arith.constant 0 : index
    %127 = vector.load %arg10[%c0_64, %c0_65] : memref<8x32xf32, #tpu.memory_space<vmem>>, vector<8x32xf32>
    %c0_66 = arith.constant 0 : index
    %c0_67 = arith.constant 0 : index
    %128 = vector.load %arg11[%c0_66, %c0_67] : memref<8x32xf32, #tpu.memory_space<vmem>>, vector<8x32xf32>
    %129 = arith.index_cast %126 : i32 to index
    %c0_68 = arith.constant 0 : index
    %130 = vector.load %arg8[%129, %c0_68] : memref<64x128xf32, #tpu.memory_space<vmem>>, vector<8x128xf32>
    %c0_69 = arith.constant 0 : index
    %c0_70 = arith.constant 0 : index
    %131 = vector.load %arg3[%c0_69, %c0_70] : memref<32x128xf32, #tpu.memory_space<vmem>>, vector<32x128xf32>
    %cst_71 = arith.constant dense<0.000000e+00> : vector<8x128xf32>
    %132 = tpu.matmul %127, %131, %cst_71 {dimension_numbers = #tpu.dot_dimension_numbers<[1], [0], [0], [1], [0, 0, 1, 1], [], []>} : vector<8x32xf32>, vector<32x128xf32>, vector<8x128xf32> -> vector<8x128xf32>
    %133 = arith.addf %130, %132 : vector<8x128xf32>
    %134 = vector.extract_strided_slice %133 {offsets = [0, 0], sizes = [8, 32], strides = [1, 1]} : vector<8x128xf32> to vector<8x32xf32>
    %135 = arith.negf %134 : vector<8x32xf32>
    %136 = math.exp %135 : vector<8x32xf32>
    %cst_72 = arith.constant 1.000000e+00 : f32
    %137 = vector.broadcast %cst_72 : f32 to vector<8x32xf32>
    %138 = arith.addf %137, %136 : vector<8x32xf32>
    %139 = arith.divf %137, %138 : vector<8x32xf32>
    %140 = vector.extract_strided_slice %133 {offsets = [0, 32], sizes = [8, 32], strides = [1, 1]} : vector<8x128xf32> to vector<8x32xf32>
    %141 = arith.negf %140 : vector<8x32xf32>
    %142 = math.exp %141 : vector<8x32xf32>
    %cst_73 = arith.constant 1.000000e+00 : f32
    %143 = vector.broadcast %cst_73 : f32 to vector<8x32xf32>
    %144 = arith.addf %143, %142 : vector<8x32xf32>
    %145 = arith.divf %143, %144 : vector<8x32xf32>
    %146 = vector.extract_strided_slice %133 {offsets = [0, 64], sizes = [8, 32], strides = [1, 1]} : vector<8x128xf32> to vector<8x32xf32>
    %147 = math.tanh %146 : vector<8x32xf32>
    %148 = vector.extract_strided_slice %133 {offsets = [0, 96], sizes = [8, 32], strides = [1, 1]} : vector<8x128xf32> to vector<8x32xf32>
    %149 = arith.negf %148 : vector<8x32xf32>
    %150 = math.exp %149 : vector<8x32xf32>
    %cst_74 = arith.constant 1.000000e+00 : f32
    %151 = vector.broadcast %cst_74 : f32 to vector<8x32xf32>
    %152 = arith.addf %151, %150 : vector<8x32xf32>
    %153 = arith.divf %151, %152 : vector<8x32xf32>
    %154 = arith.mulf %145, %128 : vector<8x32xf32>
    %155 = arith.mulf %139, %147 : vector<8x32xf32>
    %156 = arith.addf %154, %155 : vector<8x32xf32>
    %157 = math.tanh %156 : vector<8x32xf32>
    %158 = arith.mulf %153, %157 : vector<8x32xf32>
    %c0_75 = arith.constant 0 : index
    %c0_76 = arith.constant 0 : index
    %159 = vector.load %arg10[%c0_75, %c0_76] : memref<8x32xf32, #tpu.memory_space<vmem>>, vector<8x32xf32>
    tpu.vector_store %arg10[%c0_75, %c0_76], %158 {strides = array<i32>} : memref<8x32xf32, #tpu.memory_space<vmem>>, vector<8x32xf32>,
    %c0_77 = arith.constant 0 : index
    %c0_78 = arith.constant 0 : index
    %160 = vector.load %arg11[%c0_77, %c0_78] : memref<8x32xf32, #tpu.memory_space<vmem>>, vector<8x32xf32>
    tpu.vector_store %arg11[%c0_77, %c0_78], %156 {strides = array<i32>} : memref<8x32xf32, #tpu.memory_space<vmem>>, vector<8x32xf32>,
    %161 = arith.index_cast %126 : i32 to index
    %c0_79 = arith.constant 0 : index
    %162 = vector.load %arg9[%161, %c0_79] : memref<64x32xf32, #tpu.memory_space<vmem>>, vector<8x32xf32>
    tpu.vector_store %arg9[%161, %c0_79], %158 {strides = array<i32>} : memref<64x32xf32, #tpu.memory_space<vmem>>, vector<8x32xf32>,
    %c4_i32 = arith.constant 4 : i32
    %c8_i32_80 = arith.constant 8 : i32
    %163 = arith.muli %c4_i32, %c8_i32_80 : i32
    %164 = tpu.assume_multiple %163, 8 : i32
    %c0_81 = arith.constant 0 : index
    %c0_82 = arith.constant 0 : index
    %165 = vector.load %arg10[%c0_81, %c0_82] : memref<8x32xf32, #tpu.memory_space<vmem>>, vector<8x32xf32>
    %c0_83 = arith.constant 0 : index
    %c0_84 = arith.constant 0 : index
    %166 = vector.load %arg11[%c0_83, %c0_84] : memref<8x32xf32, #tpu.memory_space<vmem>>, vector<8x32xf32>
    %167 = arith.index_cast %164 : i32 to index
    %c0_85 = arith.constant 0 : index
    %168 = vector.load %arg8[%167, %c0_85] : memref<64x128xf32, #tpu.memory_space<vmem>>, vector<8x128xf32>
    %c0_86 = arith.constant 0 : index
    %c0_87 = arith.constant 0 : index
    %169 = vector.load %arg3[%c0_86, %c0_87] : memref<32x128xf32, #tpu.memory_space<vmem>>, vector<32x128xf32>
    %cst_88 = arith.constant dense<0.000000e+00> : vector<8x128xf32>
    %170 = tpu.matmul %165, %169, %cst_88 {dimension_numbers = #tpu.dot_dimension_numbers<[1], [0], [0], [1], [0, 0, 1, 1], [], []>} : vector<8x32xf32>, vector<32x128xf32>, vector<8x128xf32> -> vector<8x128xf32>
    %171 = arith.addf %168, %170 : vector<8x128xf32>
    %172 = vector.extract_strided_slice %171 {offsets = [0, 0], sizes = [8, 32], strides = [1, 1]} : vector<8x128xf32> to vector<8x32xf32>
    %173 = arith.negf %172 : vector<8x32xf32>
    %174 = math.exp %173 : vector<8x32xf32>
    %cst_89 = arith.constant 1.000000e+00 : f32
    %175 = vector.broadcast %cst_89 : f32 to vector<8x32xf32>
    %176 = arith.addf %175, %174 : vector<8x32xf32>
    %177 = arith.divf %175, %176 : vector<8x32xf32>
    %178 = vector.extract_strided_slice %171 {offsets = [0, 32], sizes = [8, 32], strides = [1, 1]} : vector<8x128xf32> to vector<8x32xf32>
    %179 = arith.negf %178 : vector<8x32xf32>
    %180 = math.exp %179 : vector<8x32xf32>
    %cst_90 = arith.constant 1.000000e+00 : f32
    %181 = vector.broadcast %cst_90 : f32 to vector<8x32xf32>
    %182 = arith.addf %181, %180 : vector<8x32xf32>
    %183 = arith.divf %181, %182 : vector<8x32xf32>
    %184 = vector.extract_strided_slice %171 {offsets = [0, 64], sizes = [8, 32], strides = [1, 1]} : vector<8x128xf32> to vector<8x32xf32>
    %185 = math.tanh %184 : vector<8x32xf32>
    %186 = vector.extract_strided_slice %171 {offsets = [0, 96], sizes = [8, 32], strides = [1, 1]} : vector<8x128xf32> to vector<8x32xf32>
    %187 = arith.negf %186 : vector<8x32xf32>
    %188 = math.exp %187 : vector<8x32xf32>
    %cst_91 = arith.constant 1.000000e+00 : f32
    %189 = vector.broadcast %cst_91 : f32 to vector<8x32xf32>
    %190 = arith.addf %189, %188 : vector<8x32xf32>
    %191 = arith.divf %189, %190 : vector<8x32xf32>
    %192 = arith.mulf %183, %166 : vector<8x32xf32>
    %193 = arith.mulf %177, %185 : vector<8x32xf32>
    %194 = arith.addf %192, %193 : vector<8x32xf32>
    %195 = math.tanh %194 : vector<8x32xf32>
    %196 = arith.mulf %191, %195 : vector<8x32xf32>
    %c0_92 = arith.constant 0 : index
    %c0_93 = arith.constant 0 : index
    %197 = vector.load %arg10[%c0_92, %c0_93] : memref<8x32xf32, #tpu.memory_space<vmem>>, vector<8x32xf32>
    tpu.vector_store %arg10[%c0_92, %c0_93], %196 {strides = array<i32>} : memref<8x32xf32, #tpu.memory_space<vmem>>, vector<8x32xf32>,
    %c0_94 = arith.constant 0 : index
    %c0_95 = arith.constant 0 : index
    %198 = vector.load %arg11[%c0_94, %c0_95] : memref<8x32xf32, #tpu.memory_space<vmem>>, vector<8x32xf32>
    tpu.vector_store %arg11[%c0_94, %c0_95], %194 {strides = array<i32>} : memref<8x32xf32, #tpu.memory_space<vmem>>, vector<8x32xf32>,
    %199 = arith.index_cast %164 : i32 to index
    %c0_96 = arith.constant 0 : index
    %200 = vector.load %arg9[%199, %c0_96] : memref<64x32xf32, #tpu.memory_space<vmem>>, vector<8x32xf32>
    tpu.vector_store %arg9[%199, %c0_96], %196 {strides = array<i32>} : memref<64x32xf32, #tpu.memory_space<vmem>>, vector<8x32xf32>,
    %c5_i32 = arith.constant 5 : i32
    %c8_i32_97 = arith.constant 8 : i32
    %201 = arith.muli %c5_i32, %c8_i32_97 : i32
    %202 = tpu.assume_multiple %201, 8 : i32
    %c0_98 = arith.constant 0 : index
    %c0_99 = arith.constant 0 : index
    %203 = vector.load %arg10[%c0_98, %c0_99] : memref<8x32xf32, #tpu.memory_space<vmem>>, vector<8x32xf32>
    %c0_100 = arith.constant 0 : index
    %c0_101 = arith.constant 0 : index
    %204 = vector.load %arg11[%c0_100, %c0_101] : memref<8x32xf32, #tpu.memory_space<vmem>>, vector<8x32xf32>
    %205 = arith.index_cast %202 : i32 to index
    %c0_102 = arith.constant 0 : index
    %206 = vector.load %arg8[%205, %c0_102] : memref<64x128xf32, #tpu.memory_space<vmem>>, vector<8x128xf32>
    %c0_103 = arith.constant 0 : index
    %c0_104 = arith.constant 0 : index
    %207 = vector.load %arg3[%c0_103, %c0_104] : memref<32x128xf32, #tpu.memory_space<vmem>>, vector<32x128xf32>
    %cst_105 = arith.constant dense<0.000000e+00> : vector<8x128xf32>
    %208 = tpu.matmul %203, %207, %cst_105 {dimension_numbers = #tpu.dot_dimension_numbers<[1], [0], [0], [1], [0, 0, 1, 1], [], []>} : vector<8x32xf32>, vector<32x128xf32>, vector<8x128xf32> -> vector<8x128xf32>
    %209 = arith.addf %206, %208 : vector<8x128xf32>
    %210 = vector.extract_strided_slice %209 {offsets = [0, 0], sizes = [8, 32], strides = [1, 1]} : vector<8x128xf32> to vector<8x32xf32>
    %211 = arith.negf %210 : vector<8x32xf32>
    %212 = math.exp %211 : vector<8x32xf32>
    %cst_106 = arith.constant 1.000000e+00 : f32
    %213 = vector.broadcast %cst_106 : f32 to vector<8x32xf32>
    %214 = arith.addf %213, %212 : vector<8x32xf32>
    %215 = arith.divf %213, %214 : vector<8x32xf32>
    %216 = vector.extract_strided_slice %209 {offsets = [0, 32], sizes = [8, 32], strides = [1, 1]} : vector<8x128xf32> to vector<8x32xf32>
    %217 = arith.negf %216 : vector<8x32xf32>
    %218 = math.exp %217 : vector<8x32xf32>
    %cst_107 = arith.constant 1.000000e+00 : f32
    %219 = vector.broadcast %cst_107 : f32 to vector<8x32xf32>
    %220 = arith.addf %219, %218 : vector<8x32xf32>
    %221 = arith.divf %219, %220 : vector<8x32xf32>
    %222 = vector.extract_strided_slice %209 {offsets = [0, 64], sizes = [8, 32], strides = [1, 1]} : vector<8x128xf32> to vector<8x32xf32>
    %223 = math.tanh %222 : vector<8x32xf32>
    %224 = vector.extract_strided_slice %209 {offsets = [0, 96], sizes = [8, 32], strides = [1, 1]} : vector<8x128xf32> to vector<8x32xf32>
    %225 = arith.negf %224 : vector<8x32xf32>
    %226 = math.exp %225 : vector<8x32xf32>
    %cst_108 = arith.constant 1.000000e+00 : f32
    %227 = vector.broadcast %cst_108 : f32 to vector<8x32xf32>
    %228 = arith.addf %227, %226 : vector<8x32xf32>
    %229 = arith.divf %227, %228 : vector<8x32xf32>
    %230 = arith.mulf %221, %204 : vector<8x32xf32>
    %231 = arith.mulf %215, %223 : vector<8x32xf32>
    %232 = arith.addf %230, %231 : vector<8x32xf32>
    %233 = math.tanh %232 : vector<8x32xf32>
    %234 = arith.mulf %229, %233 : vector<8x32xf32>
    %c0_109 = arith.constant 0 : index
    %c0_110 = arith.constant 0 : index
    %235 = vector.load %arg10[%c0_109, %c0_110] : memref<8x32xf32, #tpu.memory_space<vmem>>, vector<8x32xf32>
    tpu.vector_store %arg10[%c0_109, %c0_110], %234 {strides = array<i32>} : memref<8x32xf32, #tpu.memory_space<vmem>>, vector<8x32xf32>,
    %c0_111 = arith.constant 0 : index
    %c0_112 = arith.constant 0 : index
    %236 = vector.load %arg11[%c0_111, %c0_112] : memref<8x32xf32, #tpu.memory_space<vmem>>, vector<8x32xf32>
    tpu.vector_store %arg11[%c0_111, %c0_112], %232 {strides = array<i32>} : memref<8x32xf32, #tpu.memory_space<vmem>>, vector<8x32xf32>,
    %237 = arith.index_cast %202 : i32 to index
    %c0_113 = arith.constant 0 : index
    %238 = vector.load %arg9[%237, %c0_113] : memref<64x32xf32, #tpu.memory_space<vmem>>, vector<8x32xf32>
    tpu.vector_store %arg9[%237, %c0_113], %234 {strides = array<i32>} : memref<64x32xf32, #tpu.memory_space<vmem>>, vector<8x32xf32>,
    %c6_i32 = arith.constant 6 : i32
    %c8_i32_114 = arith.constant 8 : i32
    %239 = arith.muli %c6_i32, %c8_i32_114 : i32
    %240 = tpu.assume_multiple %239, 8 : i32
    %c0_115 = arith.constant 0 : index
    %c0_116 = arith.constant 0 : index
    %241 = vector.load %arg10[%c0_115, %c0_116] : memref<8x32xf32, #tpu.memory_space<vmem>>, vector<8x32xf32>
    %c0_117 = arith.constant 0 : index
    %c0_118 = arith.constant 0 : index
    %242 = vector.load %arg11[%c0_117, %c0_118] : memref<8x32xf32, #tpu.memory_space<vmem>>, vector<8x32xf32>
    %243 = arith.index_cast %240 : i32 to index
    %c0_119 = arith.constant 0 : index
    %244 = vector.load %arg8[%243, %c0_119] : memref<64x128xf32, #tpu.memory_space<vmem>>, vector<8x128xf32>
    %c0_120 = arith.constant 0 : index
    %c0_121 = arith.constant 0 : index
    %245 = vector.load %arg3[%c0_120, %c0_121] : memref<32x128xf32, #tpu.memory_space<vmem>>, vector<32x128xf32>
    %cst_122 = arith.constant dense<0.000000e+00> : vector<8x128xf32>
    %246 = tpu.matmul %241, %245, %cst_122 {dimension_numbers = #tpu.dot_dimension_numbers<[1], [0], [0], [1], [0, 0, 1, 1], [], []>} : vector<8x32xf32>, vector<32x128xf32>, vector<8x128xf32> -> vector<8x128xf32>
    %247 = arith.addf %244, %246 : vector<8x128xf32>
    %248 = vector.extract_strided_slice %247 {offsets = [0, 0], sizes = [8, 32], strides = [1, 1]} : vector<8x128xf32> to vector<8x32xf32>
    %249 = arith.negf %248 : vector<8x32xf32>
    %250 = math.exp %249 : vector<8x32xf32>
    %cst_123 = arith.constant 1.000000e+00 : f32
    %251 = vector.broadcast %cst_123 : f32 to vector<8x32xf32>
    %252 = arith.addf %251, %250 : vector<8x32xf32>
    %253 = arith.divf %251, %252 : vector<8x32xf32>
    %254 = vector.extract_strided_slice %247 {offsets = [0, 32], sizes = [8, 32], strides = [1, 1]} : vector<8x128xf32> to vector<8x32xf32>
    %255 = arith.negf %254 : vector<8x32xf32>
    %256 = math.exp %255 : vector<8x32xf32>
    %cst_124 = arith.constant 1.000000e+00 : f32
    %257 = vector.broadcast %cst_124 : f32 to vector<8x32xf32>
    %258 = arith.addf %257, %256 : vector<8x32xf32>
    %259 = arith.divf %257, %258 : vector<8x32xf32>
    %260 = vector.extract_strided_slice %247 {offsets = [0, 64], sizes = [8, 32], strides = [1, 1]} : vector<8x128xf32> to vector<8x32xf32>
    %261 = math.tanh %260 : vector<8x32xf32>
    %262 = vector.extract_strided_slice %247 {offsets = [0, 96], sizes = [8, 32], strides = [1, 1]} : vector<8x128xf32> to vector<8x32xf32>
    %263 = arith.negf %262 : vector<8x32xf32>
    %264 = math.exp %263 : vector<8x32xf32>
    %cst_125 = arith.constant 1.000000e+00 : f32
    %265 = vector.broadcast %cst_125 : f32 to vector<8x32xf32>
    %266 = arith.addf %265, %264 : vector<8x32xf32>
    %267 = arith.divf %265, %266 : vector<8x32xf32>
    %268 = arith.mulf %259, %242 : vector<8x32xf32>
    %269 = arith.mulf %253, %261 : vector<8x32xf32>
    %270 = arith.addf %268, %269 : vector<8x32xf32>
    %271 = math.tanh %270 : vector<8x32xf32>
    %272 = arith.mulf %267, %271 : vector<8x32xf32>
    %c0_126 = arith.constant 0 : index
    %c0_127 = arith.constant 0 : index
    %273 = vector.load %arg10[%c0_126, %c0_127] : memref<8x32xf32, #tpu.memory_space<vmem>>, vector<8x32xf32>
    tpu.vector_store %arg10[%c0_126, %c0_127], %272 {strides = array<i32>} : memref<8x32xf32, #tpu.memory_space<vmem>>, vector<8x32xf32>,
    %c0_128 = arith.constant 0 : index
    %c0_129 = arith.constant 0 : index
    %274 = vector.load %arg11[%c0_128, %c0_129] : memref<8x32xf32, #tpu.memory_space<vmem>>, vector<8x32xf32>
    tpu.vector_store %arg11[%c0_128, %c0_129], %270 {strides = array<i32>} : memref<8x32xf32, #tpu.memory_space<vmem>>, vector<8x32xf32>,
    %275 = arith.index_cast %240 : i32 to index
    %c0_130 = arith.constant 0 : index
    %276 = vector.load %arg9[%275, %c0_130] : memref<64x32xf32, #tpu.memory_space<vmem>>, vector<8x32xf32>
    tpu.vector_store %arg9[%275, %c0_130], %272 {strides = array<i32>} : memref<64x32xf32, #tpu.memory_space<vmem>>, vector<8x32xf32>,
    %c7_i32 = arith.constant 7 : i32
    %c8_i32_131 = arith.constant 8 : i32
    %277 = arith.muli %c7_i32, %c8_i32_131 : i32
    %278 = tpu.assume_multiple %277, 8 : i32
    %c0_132 = arith.constant 0 : index
    %c0_133 = arith.constant 0 : index
    %279 = vector.load %arg10[%c0_132, %c0_133] : memref<8x32xf32, #tpu.memory_space<vmem>>, vector<8x32xf32>
    %c0_134 = arith.constant 0 : index
    %c0_135 = arith.constant 0 : index
    %280 = vector.load %arg11[%c0_134, %c0_135] : memref<8x32xf32, #tpu.memory_space<vmem>>, vector<8x32xf32>
    %281 = arith.index_cast %278 : i32 to index
    %c0_136 = arith.constant 0 : index
    %282 = vector.load %arg8[%281, %c0_136] : memref<64x128xf32, #tpu.memory_space<vmem>>, vector<8x128xf32>
    %c0_137 = arith.constant 0 : index
    %c0_138 = arith.constant 0 : index
    %283 = vector.load %arg3[%c0_137, %c0_138] : memref<32x128xf32, #tpu.memory_space<vmem>>, vector<32x128xf32>
    %cst_139 = arith.constant dense<0.000000e+00> : vector<8x128xf32>
    %284 = tpu.matmul %279, %283, %cst_139 {dimension_numbers = #tpu.dot_dimension_numbers<[1], [0], [0], [1], [0, 0, 1, 1], [], []>} : vector<8x32xf32>, vector<32x128xf32>, vector<8x128xf32> -> vector<8x128xf32>
    %285 = arith.addf %282, %284 : vector<8x128xf32>
    %286 = vector.extract_strided_slice %285 {offsets = [0, 0], sizes = [8, 32], strides = [1, 1]} : vector<8x128xf32> to vector<8x32xf32>
    %287 = arith.negf %286 : vector<8x32xf32>
    %288 = math.exp %287 : vector<8x32xf32>
    %cst_140 = arith.constant 1.000000e+00 : f32
    %289 = vector.broadcast %cst_140 : f32 to vector<8x32xf32>
    %290 = arith.addf %289, %288 : vector<8x32xf32>
    %291 = arith.divf %289, %290 : vector<8x32xf32>
    %292 = vector.extract_strided_slice %285 {offsets = [0, 32], sizes = [8, 32], strides = [1, 1]} : vector<8x128xf32> to vector<8x32xf32>
    %293 = arith.negf %292 : vector<8x32xf32>
    %294 = math.exp %293 : vector<8x32xf32>
    %cst_141 = arith.constant 1.000000e+00 : f32
    %295 = vector.broadcast %cst_141 : f32 to vector<8x32xf32>
    %296 = arith.addf %295, %294 : vector<8x32xf32>
    %297 = arith.divf %295, %296 : vector<8x32xf32>
    %298 = vector.extract_strided_slice %285 {offsets = [0, 64], sizes = [8, 32], strides = [1, 1]} : vector<8x128xf32> to vector<8x32xf32>
    %299 = math.tanh %298 : vector<8x32xf32>
    %300 = vector.extract_strided_slice %285 {offsets = [0, 96], sizes = [8, 32], strides = [1, 1]} : vector<8x128xf32> to vector<8x32xf32>
    %301 = arith.negf %300 : vector<8x32xf32>
    %302 = math.exp %301 : vector<8x32xf32>
    %cst_142 = arith.constant 1.000000e+00 : f32
    %303 = vector.broadcast %cst_142 : f32 to vector<8x32xf32>
    %304 = arith.addf %303, %302 : vector<8x32xf32>
    %305 = arith.divf %303, %304 : vector<8x32xf32>
    %306 = arith.mulf %297, %280 : vector<8x32xf32>
    %307 = arith.mulf %291, %299 : vector<8x32xf32>
    %308 = arith.addf %306, %307 : vector<8x32xf32>
    %309 = math.tanh %308 : vector<8x32xf32>
    %310 = arith.mulf %305, %309 : vector<8x32xf32>
    %c0_143 = arith.constant 0 : index
    %c0_144 = arith.constant 0 : index
    %311 = vector.load %arg10[%c0_143, %c0_144] : memref<8x32xf32, #tpu.memory_space<vmem>>, vector<8x32xf32>
    tpu.vector_store %arg10[%c0_143, %c0_144], %310 {strides = array<i32>} : memref<8x32xf32, #tpu.memory_space<vmem>>, vector<8x32xf32>,
    %c0_145 = arith.constant 0 : index
    %c0_146 = arith.constant 0 : index
    %312 = vector.load %arg11[%c0_145, %c0_146] : memref<8x32xf32, #tpu.memory_space<vmem>>, vector<8x32xf32>
    tpu.vector_store %arg11[%c0_145, %c0_146], %308 {strides = array<i32>} : memref<8x32xf32, #tpu.memory_space<vmem>>, vector<8x32xf32>,
    %313 = arith.index_cast %278 : i32 to index
    %c0_147 = arith.constant 0 : index
    %314 = vector.load %arg9[%313, %c0_147] : memref<64x32xf32, #tpu.memory_space<vmem>>, vector<8x32xf32>
    tpu.vector_store %arg9[%313, %c0_147], %310 {strides = array<i32>} : memref<64x32xf32, #tpu.memory_space<vmem>>, vector<8x32xf32>,
    %c8_i32_148 = arith.constant 8 : i32
    %c0_149 = arith.constant 0 : index
    %c0_150 = arith.constant 0 : index
    %315 = vector.load %arg9[%c0_149, %c0_150] : memref<64x32xf32, #tpu.memory_space<vmem>>, vector<64x32xf32>
    %c0_151 = arith.constant 0 : index
    %c0_152 = arith.constant 0 : index
    %316 = vector.load %arg5[%c0_151, %c0_152] : memref<32x128xf32, #tpu.memory_space<vmem>>, vector<32x128xf32>
    %cst_153 = arith.constant dense<0.000000e+00> : vector<64x128xf32>
    %317 = tpu.matmul %315, %316, %cst_153 {dimension_numbers = #tpu.dot_dimension_numbers<[1], [0], [0], [1], [0, 0, 1, 1], [], []>} : vector<64x32xf32>, vector<32x128xf32>, vector<64x128xf32> -> vector<64x128xf32>
    %c0_154 = arith.constant 0 : index
    %c0_155 = arith.constant 0 : index
    %318 = vector.load %arg6[%c0_154, %c0_155] : memref<1x128xf32, #tpu.memory_space<vmem>>, vector<1x128xf32>
    %319 = vector.broadcast %318 : vector<1x128xf32> to vector<64x128xf32>
    %320 = arith.addf %317, %319 : vector<64x128xf32>
    %c0_156 = arith.constant 0 : index
    %c0_157 = arith.constant 0 : index
    %321 = vector.load %arg7[%c0_156, %c0_157] : memref<64x128xf32, #tpu.memory_space<vmem>>, vector<64x128xf32>
    tpu.vector_store %arg7[%c0_156, %c0_157], %320 {strides = array<i32>} : memref<64x128xf32, #tpu.memory_space<vmem>>, vector<64x128xf32>,
    return
  }
  func.func @transform_0(%arg0: i32) -> (i32, i32) {
    %c0_i32 = arith.constant 0 : i32
    %c0_i32_0 = arith.constant 0 : i32
    %c0_i32_1 = arith.constant 0 : i32
    return %c0_i32, %c0_i32_0 : i32, i32
  }
  func.func @transform_1(%arg0: i32) -> (i32, i32) {
    %c0_i32 = arith.constant 0 : i32
    %c0_i32_0 = arith.constant 0 : i32
    %c0_i32_1 = arith.constant 0 : i32
    return %c0_i32, %c0_i32_0 : i32, i32
  }
  func.func @transform_2(%arg0: i32) -> (i32, i32) {
    %c0_i32 = arith.constant 0 : i32
    %c0_i32_0 = arith.constant 0 : i32
    %c0_i32_1 = arith.constant 0 : i32
    return %c0_i32, %c0_i32_0 : i32, i32
  }
  func.func @transform_3(%arg0: i32) -> (i32, i32) {
    %c0_i32 = arith.constant 0 : i32
    %c0_i32_0 = arith.constant 0 : i32
    %c0_i32_1 = arith.constant 0 : i32
    return %c0_i32, %c0_i32_0 : i32, i32
  }
  func.func @transform_4(%arg0: i32) -> (i32, i32) {
    %c0_i32 = arith.constant 0 : i32
    %c0_i32_0 = arith.constant 0 : i32
    %c0_i32_1 = arith.constant 0 : i32
    return %c0_i32, %c0_i32_0 : i32, i32
  }
  func.func @transform_5(%arg0: i32) -> (i32, i32) {
    %c0_i32 = arith.constant 0 : i32
    %c0_i32_0 = arith.constant 0 : i32
    %c0_i32_1 = arith.constant 0 : i32
    return %c0_i32, %c0_i32_0 : i32, i32
  }
  func.func @transform_6(%arg0: i32) -> (i32, i32) {
    %c0_i32 = arith.constant 0 : i32
    %c0_i32_0 = arith.constant 0 : i32
    %c0_i32_1 = arith.constant 0 : i32
    return %c0_i32, %c0_i32_0 : i32, i32
  }
}

</mosaic_0001>

<llo_original>
// kernel: tpu_custom_call.1
$region0: #{tpu_custom_call.1}
  #allocation0 [shape = 'u32[]', space=smem, size = 0x4, offset = 0x4, fixed_abs, tag = 'smem constant byte address 0x4 - core index']
  #allocation1 [shape = 'u32[72,128]{1,0:T(1,128)}', space=vmem, size = 0x9000, scoped, tag = 'internal scratch']
  #allocation2 [shape = 'f32[64,128]{1,0:T(8,128)}', space=vmem, size = 0x8000, scoped, tag = 'scratch operand']
  #allocation3 [shape = 'f32[64,32]{1,0:T(8,128)}', space=vmem, size = 0x8000, scoped, tag = 'scratch operand']
  #allocation4 [shape = 'f32[8,32]{1,0:T(8,128)}', space=vmem, size = 0x1000, scoped, tag = 'scratch operand']
  #allocation5 [shape = 'f32[8,32]{1,0:T(8,128)}', space=vmem, size = 0x1000, scoped, tag = 'scratch operand']
  %s0 = inlined_call_operand.vmem [shape: f32[64,32], index: 0, kind: input, shape index: {}]
  %s1 = inlined_call_operand.vmem [shape: f32[32,128], index: 1, kind: input, shape index: {}]
  %s2 = inlined_call_operand.vmem [shape: f32[32,128], index: 2, kind: input, shape index: {}]
  %s3 = inlined_call_operand.vmem [shape: f32[1,128], index: 3, kind: input, shape index: {}]
  %s4 = inlined_call_operand.vmem [shape: f32[32,128], index: 4, kind: input, shape index: {}]
  %s5 = inlined_call_operand.vmem [shape: f32[1,128], index: 5, kind: input, shape index: {}]
  %s6 = inlined_call_operand.hbm [shape: f32[64,128], index: 6, kind: output, shape index: {}]
  %s7 = sld [smem:[#allocation0]]
  $region34: #{tpu_custom_call.1} parent=0
    _
  %s9 = ssub.s32 1, %s7
  %s10 = scalar_select 0, %s9, %s7
  $region1: #{tpu_custom_call.1} parent=0
    #allocation6 [shape = 'u8[32768]{0}', space=vmem, size = 0x8000, scoped, tag = 'output window, operand 0, single buffered']
    #allocation7 [shape = 's32[1]{0}', space=sflag, size = 0x4, scoped, tag = 'scoped memory for tpu_custom_call.1']
    %11 = vsyncpa [#allocation7], 0
    // Predicated region
    $region2: #{tpu_custom_call.1} parent=1 // pred_check
      _
    $region3: #{tpu_custom_call.1} parent=1 // pred_check_branch
      %13 = sbr.rel (0) target = $region5
    $region4: #{tpu_custom_call.1} parent=1 // pred_region
      _
    $region5: #{tpu_custom_call.1} parent=1 // pred_fallthru
      _
    // Predicated region
    $region6: #{tpu_custom_call.1} parent=1 // pred_check
      _
    $region7: #{tpu_custom_call.1} parent=1 // pred_check_branch
      %15 = sbr.rel (0) target = $region9
    $region8: #{tpu_custom_call.1} parent=1 // pred_region
      _
    $region9: #{tpu_custom_call.1} parent=1 // pred_fallthru
      _
    // Predicated region
    $region10: #{tpu_custom_call.1} parent=1 // pred_check
      _
    $region11: #{tpu_custom_call.1} parent=1 // pred_check_branch
      %17 = sbr.rel (0) target = $region13
    $region12: #{tpu_custom_call.1} parent=1 // pred_region
      _
    $region13: #{tpu_custom_call.1} parent=1 // pred_fallthru
      _
    // Predicated region
    $region14: #{tpu_custom_call.1} parent=1 // pred_check
      _
    $region15: #{tpu_custom_call.1} parent=1 // pred_check_branch
      %19 = sbr.rel (0) target = $region17
    $region16: #{tpu_custom_call.1} parent=1 // pred_region
      _
    $region17: #{tpu_custom_call.1} parent=1 // pred_fallthru
      _
    // Predicated region
    $region18: #{tpu_custom_call.1} parent=1 // pred_check
      _
    $region19: #{tpu_custom_call.1} parent=1 // pred_check_branch
      %21 = sbr.rel (0) target = $region21
    $region20: #{tpu_custom_call.1} parent=1 // pred_region
      _
    $region21: #{tpu_custom_call.1} parent=1 // pred_fallthru
      _
    // Predicated region
    $region22: #{tpu_custom_call.1} parent=1 // pred_check
      _
    $region23: #{tpu_custom_call.1} parent=1 // pred_check_branch
      %23 = sbr.rel (0) target = $region25
    $region24: #{tpu_custom_call.1} parent=1 // pred_region
      _
    $region25: #{tpu_custom_call.1} parent=1 // pred_fallthru
      _
    %v24 = vld [vmem:[%s0] sm:$0xff]
    %v25 = vld [vmem:[%s0 + $0x8] sm:$0xff]
    %v26 = vld [vmem:[%s0 + $0x10] sm:$0xff]
    %v27 = vld [vmem:[%s0 + $0x18] sm:$0xff]
    %v28 = vld [vmem:[%s0 + $0x20] sm:$0xff]
    %v29 = vld [vmem:[%s0 + $0x28] sm:$0xff]
    %v30 = vld [vmem:[%s0 + $0x30] sm:$0xff]
    %v31 = vld [vmem:[%s0 + $0x38] sm:$0xff]
    %v32 = vld [vmem:[%s1] sm:$0xff]
    %v33 = vld [vmem:[%s1 + $0x8] sm:$0xff]
    %v34 = vld [vmem:[%s1 + $0x10] sm:$0xff]
    %v35 = vld [vmem:[%s1 + $0x18] sm:$0xff]
    %v36 = vld [vmem:[%s3] sm:$0x1]
    %v38 = vperm.slane %v36, 0
    %vm40 = vcmask 261120
    %v42 = vsel %vm40, %v24, 0
    %v45 = vsel %vm40, %v25, 0
    %v48 = vsel %vm40, %v26, 0
    %v51 = vsel %vm40, %v27, 0
    %v54 = vsel %vm40, %v28, 0
    %v57 = vsel %vm40, %v29, 0
    %v60 = vsel %vm40, %v30, 0
    %v63 = vsel %vm40, %v31, 0
    %65 = vmatpush.msra.mxu0 0.0
    %66 = vmatpush.msra.mxu0 0.0
    %67 = vmatpush.msra.mxu0 0.0
    %68 = vmatpush.msra.mxu0 0.0
    %69 = vmatpush.msra.mxu0 0.0
    %70 = vmatpush.msra.mxu0 0.0
    %71 = vmatpush.msra.mxu0 0.0
    %72 = vmatpush.msra.mxu0 0.0
    %73 = vmatpush.msra.mxu0 0.0
    %74 = vmatpush.msra.mxu0 0.0
    %75 = vmatpush.msra.mxu0 0.0
    %76 = vmatpush.msra.mxu0 0.0
    %77 = vmatpush.msra.mxu0 %v35
    %78 = vmatpush.msra.mxu0 %v34
    %79 = vmatpush.msra.mxu0 %v33
    %80 = vmatpush.msra.mxu0 %v32
    %81 = vmatmul.f32.gmra.mxu0 %v42
    %v82 = vpop.f32.mrf.mxu0
    %v83 = vadd.f32 %v38, %v82
    %84 = vmatmul.f32.gmra.mxu0 %v45
    %v85 = vpop.f32.mrf.mxu0
    %v86 = vadd.f32 %v38, %v85
    %87 = vmatmul.f32.gmra.mxu0 %v48
    %v88 = vpop.f32.mrf.mxu0
    %v89 = vadd.f32 %v38, %v88
    %90 = vmatmul.f32.gmra.mxu0 %v51
    %v91 = vpop.f32.mrf.mxu0
    %v92 = vadd.f32 %v38, %v91
    %93 = vmatmul.f32.gmra.mxu0 %v54
    %v94 = vpop.f32.mrf.mxu0
    %v95 = vadd.f32 %v38, %v94
    %96 = vmatmul.f32.gmra.mxu0 %v57
    %v97 = vpop.f32.mrf.mxu0
    %v98 = vadd.f32 %v38, %v97
    %99 = vmatmul.f32.gmra.mxu0 %v60
    %v100 = vpop.f32.mrf.mxu0
    %v101 = vadd.f32 %v38, %v100
    %102 = vmatmul.f32.gmra.mxu0 %v63
    %v103 = vpop.f32.mrf.mxu0
    %v104 = vadd.f32 %v38, %v103
    %105 = vdwg.mxu0
    %106 = vst [vmem:[#allocation2] sm:$0xff] %v83
    %107 = vst [vmem:[#allocation2 + $0x8] sm:$0xff] %v86
    %108 = vst [vmem:[#allocation2 + $0x10] sm:$0xff] %v89
    %109 = vst [vmem:[#allocation2 + $0x18] sm:$0xff] %v92
    %110 = vst [vmem:[#allocation2 + $0x20] sm:$0xff] %v95
    %111 = vst [vmem:[#allocation2 + $0x28] sm:$0xff] %v98
    %112 = vst [vmem:[#allocation2 + $0x30] sm:$0xff] %v101
    %113 = vst [vmem:[#allocation2 + $0x38] sm:$0xff] %v104
    %114 = vst.msk [vmem:[#allocation4] sm:$0xff] %vm40, 0.0
    %115 = vst.msk [vmem:[#allocation5] sm:$0xff] %vm40, 0.0
    %v116 = vld [vmem:[#allocation4] sm:$0xff]
    %v117 = vld [vmem:[#allocation5] sm:$0xff]
    %v118 = vld [vmem:[#allocation2] sm:$0xff]
    %v119 = vld [vmem:[%s2] sm:$0xff]
    %v120 = vld [vmem:[%s2 + $0x8] sm:$0xff]
    %v121 = vld [vmem:[%s2 + $0x10] sm:$0xff]
    %v122 = vld [vmem:[%s2 + $0x18] sm:$0xff]
    %v124 = vsel %vm40, %v116, 0
    %126 = vmatpush.msra.mxu0 0.0
    %127 = vmatpush.msra.mxu0 0.0
    %128 = vmatpush.msra.mxu0 0.0
    %129 = vmatpush.msra.mxu0 0.0
    %130 = vmatpush.msra.mxu0 0.0
    %131 = vmatpush.msra.mxu0 0.0
    %132 = vmatpush.msra.mxu0 0.0
    %133 = vmatpush.msra.mxu0 0.0
    %134 = vmatpush.msra.mxu0 0.0
    %135 = vmatpush.msra.mxu0 0.0
    %136 = vmatpush.msra.mxu0 0.0
    %137 = vmatpush.msra.mxu0 0.0
    %138 = vmatpush.msra.mxu0 %v122
    %139 = vmatpush.msra.mxu0 %v121
    %140 = vmatpush.msra.mxu0 %v120
    %141 = vmatpush.msra.mxu0 %v119
    %142 = vmatmul.f32.gmra.mxu0 %v124
    %v143 = vpop.f32.mrf.mxu0
    %v144 = vadd.f32 0.0, %v143
    %145 = vdwg.mxu0
    %v146 = vadd.f32 %v118, %v144
    %v147 = vxor.u32 %v146, 2147483648
    %v148 = vmul.f32 %v147, 1.442695
    %v149 = vpow.pop %v148
    %v150 = vadd.f32 %v149, 1.0
    %v151 = vrcp.pop %v150
    %v152 = vmul.f32 %v150, %v151
    %v153 = vsub.f32 1.0, %v152
    %v154 = vmul.f32 %v151, %v153
    %v155 = vadd.f32 %v151, %v154
    %vm156 = vweird.f32 %v150
    %vm157 = vweird.f32 %v151
    %vm158 = vmor %vm156, %vm157
    %v159 = vsel %vm158, %v151, %v155
    %v160 = vand.u32 2147483647, %v150
    %vm161 = vcmp.eq.f32.partialorder %v160, 8.507059e+37
    %v162 = vand.u32 %v150, 2147483648
    %v163 = vor.u32 1.1754944e-38, %v162
    %v164 = vsel %vm161, %v163, %v159
    %v165 = vmul.f32 1.0, %v164
    %v166 = vtanh.pop %v146
    %168 = vrot.lane.b32.xlu0 %v117, 32
    %v169 = vpop.permute.xlu0 %168
    %v171 = vmul.f32 %v165, %v169
    %173 = vrot.lane.b32.xlu0 %v166, 64
    %v174 = vpop.permute.xlu0 %173
    %v176 = vmul.f32 %v165, %v174
    %178 = vrot.lane.b32.xlu0 %v176, 32
    %v179 = vpop.permute.xlu0 %178
    %v181 = vadd.f32 %v171, %v179
    %v182 = vtanh.pop %v181
    %184 = vrot.lane.b32.xlu0 %v182, 64
    %v185 = vpop.permute.xlu0 %184
    %v187 = vmul.f32 %v165, %v185
    %189 = vrot.lane.b32.xlu0 %v187, 32
    %v190 = vpop.permute.xlu0 %189
    %192 = vst.msk [vmem:[#allocation4] sm:$0xff] %vm40, %v190
    %194 = vrot.lane.b32.xlu0 %v181, 96
    %v195 = vpop.permute.xlu0 %194
    %197 = vst.msk [vmem:[#allocation5] sm:$0xff] %vm40, %v195
    %198 = vst.msk [vmem:[#allocation3] sm:$0xff] %vm40, %v190
    %v199 = vld [vmem:[#allocation4] sm:$0xff]
    %v200 = vld [vmem:[#allocation5] sm:$0xff]
    %s201 = scalar_lea.vmem [#allocation2], 8
    %v202 = vld [vmem:[%s201] sm:$0xff]
    %v203 = vld [vmem:[%s2] sm:$0xff]
    %v204 = vld [vmem:[%s2 + $0x8] sm:$0xff]
    %v205 = vld [vmem:[%s2 + $0x10] sm:$0xff]
    %v206 = vld [vmem:[%s2 + $0x18] sm:$0xff]
    %v208 = vsel %vm40, %v199, 0
    %210 = vmatpush.msra.mxu0 0.0
    %211 = vmatpush.msra.mxu0 0.0
    %212 = vmatpush.msra.mxu0 0.0
    %213 = vmatpush.msra.mxu0 0.0
    %214 = vmatpush.msra.mxu0 0.0
    %215 = vmatpush.msra.mxu0 0.0
    %216 = vmatpush.msra.mxu0 0.0
    %217 = vmatpush.msra.mxu0 0.0
    %218 = vmatpush.msra.mxu0 0.0
    %219 = vmatpush.msra.mxu0 0.0
    %220 = vmatpush.msra.mxu0 0.0
    %221 = vmatpush.msra.mxu0 0.0
    %222 = vmatpush.msra.mxu0 %v206
    %223 = vmatpush.msra.mxu0 %v205
    %224 = vmatpush.msra.mxu0 %v204
    %225 = vmatpush.msra.mxu0 %v203
    %226 = vmatmul.f32.gmra.mxu0 %v208
    %v227 = vpop.f32.mrf.mxu0
    %v228 = vadd.f32 0.0, %v227
    %229 = vdwg.mxu0
    %v230 = vadd.f32 %v202, %v228
    %v231 = vxor.u32 %v230, 2147483648
    %v232 = vmul.f32 %v231, 1.442695
    %v233 = vpow.pop %v232
    %v234 = vadd.f32 %v233, 1.0
    %v235 = vrcp.pop %v234
    %v236 = vmul.f32 %v234, %v235
    %v237 = vsub.f32 1.0, %v236
    %v238 = vmul.f32 %v235, %v237
    %v239 = vadd.f32 %v235, %v238
    %vm240 = vweird.f32 %v234
    %vm241 = vweird.f32 %v235
    %vm242 = vmor %vm240, %vm241
    %v243 = vsel %vm242, %v235, %v239
    %v244 = vand.u32 2147483647, %v234
    %vm245 = vcmp.eq.f32.partialorder %v244, 8.507059e+37
    %v246 = vand.u32 %v234, 2147483648
    %v247 = vor.u32 1.1754944e-38, %v246
    %v248 = vsel %vm245, %v247, %v243
    %v249 = vmul.f32 1.0, %v248
    %v250 = vtanh.pop %v230
    %252 = vrot.lane.b32.xlu0 %v200, 32
    %v253 = vpop.permute.xlu0 %252
    %v255 = vmul.f32 %v249, %v253
    %257 = vrot.lane.b32.xlu0 %v250, 64
    %v258 = vpop.permute.xlu0 %257
    %v260 = vmul.f32 %v249, %v258
    %262 = vrot.lane.b32.xlu0 %v260, 32
    %v263 = vpop.permute.xlu0 %262
    %v265 = vadd.f32 %v255, %v263
    %v266 = vtanh.pop %v265
    %268 = vrot.lane.b32.xlu0 %v266, 64
    %v269 = vpop.permute.xlu0 %268
    %v271 = vmul.f32 %v249, %v269
    %273 = vrot.lane.b32.xlu0 %v271, 32
    %v274 = vpop.permute.xlu0 %273
    %276 = vst.msk [vmem:[#allocation4] sm:$0xff] %vm40, %v274
    %278 = vrot.lane.b32.xlu0 %v265, 96
    %v279 = vpop.permute.xlu0 %278
    %281 = vst.msk [vmem:[#allocation5] sm:$0xff] %vm40, %v279
    %s282 = scalar_lea.vmem [#allocation3], 8
    %283 = vst.msk [vmem:[%s282] sm:$0xff] %vm40, %v274
    %v284 = vld [vmem:[#allocation4] sm:$0xff]
    %v285 = vld [vmem:[#allocation5] sm:$0xff]
    %s286 = scalar_lea.vmem [#allocation2], 16
    %v287 = vld [vmem:[%s286] sm:$0xff]
    %v288 = vld [vmem:[%s2] sm:$0xff]
    %v289 = vld [vmem:[%s2 + $0x8] sm:$0xff]
    %v290 = vld [vmem:[%s2 + $0x10] sm:$0xff]
    %v291 = vld [vmem:[%s2 + $0x18] sm:$0xff]
    %v293 = vsel %vm40, %v284, 0
    %295 = vmatpush.msra.mxu0 0.0
    %296 = vmatpush.msra.mxu0 0.0
    %297 = vmatpush.msra.mxu0 0.0
    %298 = vmatpush.msra.mxu0 0.0
    %299 = vmatpush.msra.mxu0 0.0
    %300 = vmatpush.msra.mxu0 0.0
    %301 = vmatpush.msra.mxu0 0.0
    %302 = vmatpush.msra.mxu0 0.0
    %303 = vmatpush.msra.mxu0 0.0
    %304 = vmatpush.msra.mxu0 0.0
    %305 = vmatpush.msra.mxu0 0.0
    %306 = vmatpush.msra.mxu0 0.0
    %307 = vmatpush.msra.mxu0 %v291
    %308 = vmatpush.msra.mxu0 %v290
    %309 = vmatpush.msra.mxu0 %v289
    %310 = vmatpush.msra.mxu0 %v288
    %311 = vmatmul.f32.gmra.mxu0 %v293
    %v312 = vpop.f32.mrf.mxu0
    %v313 = vadd.f32 0.0, %v312
    %314 = vdwg.mxu0
    %v315 = vadd.f32 %v287, %v313
    %v316 = vxor.u32 %v315, 2147483648
    %v317 = vmul.f32 %v316, 1.442695
    %v318 = vpow.pop %v317
    %v319 = vadd.f32 %v318, 1.0
    %v320 = vrcp.pop %v319
    %v321 = vmul.f32 %v319, %v320
    %v322 = vsub.f32 1.0, %v321
    %v323 = vmul.f32 %v320, %v322
    %v324 = vadd.f32 %v320, %v323
    %vm325 = vweird.f32 %v319
    %vm326 = vweird.f32 %v320
    %vm327 = vmor %vm325, %vm326
    %v328 = vsel %vm327, %v320, %v324
    %v329 = vand.u32 2147483647, %v319
    %vm330 = vcmp.eq.f32.partialorder %v329, 8.507059e+37
    %v331 = vand.u32 %v319, 2147483648
    %v332 = vor.u32 1.1754944e-38, %v331
    %v333 = vsel %vm330, %v332, %v328
    %v334 = vmul.f32 1.0, %v333
    %v335 = vtanh.pop %v315
    %337 = vrot.lane.b32.xlu0 %v285, 32
    %v338 = vpop.permute.xlu0 %337
    %v340 = vmul.f32 %v334, %v338
    %342 = vrot.lane.b32.xlu0 %v335, 64
    %v343 = vpop.permute.xlu0 %342
    %v345 = vmul.f32 %v334, %v343
    %347 = vrot.lane.b32.xlu0 %v345, 32
    %v348 = vpop.permute.xlu0 %347
    %v350 = vadd.f32 %v340, %v348
    %v351 = vtanh.pop %v350
    %353 = vrot.lane.b32.xlu0 %v351, 64
    %v354 = vpop.permute.xlu0 %353
    %v356 = vmul.f32 %v334, %v354
    %358 = vrot.lane.b32.xlu0 %v356, 32
    %v359 = vpop.permute.xlu0 %358
    %361 = vst.msk [vmem:[#allocation4] sm:$0xff] %vm40, %v359
    %363 = vrot.lane.b32.xlu0 %v350, 96
    %v364 = vpop.permute.xlu0 %363
    %366 = vst.msk [vmem:[#allocation5] sm:$0xff] %vm40, %v364
    %s367 = scalar_lea.vmem [#allocation3], 16
    %368 = vst.msk [vmem:[%s367] sm:$0xff] %vm40, %v359
    %v369 = vld [vmem:[#allocation4] sm:$0xff]
    %v370 = vld [vmem:[#allocation5] sm:$0xff]
    %s371 = scalar_lea.vmem [#allocation2], 24
    %v372 = vld [vmem:[%s371] sm:$0xff]
    %v373 = vld [vmem:[%s2] sm:$0xff]
    %v374 = vld [vmem:[%s2 + $0x8] sm:$0xff]
    %v375 = vld [vmem:[%s2 + $0x10] sm:$0xff]
    %v376 = vld [vmem:[%s2 + $0x18] sm:$0xff]
    %v378 = vsel %vm40, %v369, 0
    %380 = vmatpush.msra.mxu0 0.0
    %381 = vmatpush.msra.mxu0 0.0
    %382 = vmatpush.msra.mxu0 0.0
    %383 = vmatpush.msra.mxu0 0.0
    %384 = vmatpush.msra.mxu0 0.0
    %385 = vmatpush.msra.mxu0 0.0
    %386 = vmatpush.msra.mxu0 0.0
    %387 = vmatpush.msra.mxu0 0.0
    %388 = vmatpush.msra.mxu0 0.0
    %389 = vmatpush.msra.mxu0 0.0
    %390 = vmatpush.msra.mxu0 0.0
    %391 = vmatpush.msra.mxu0 0.0
    %392 = vmatpush.msra.mxu0 %v376
    %393 = vmatpush.msra.mxu0 %v375
    %394 = vmatpush.msra.mxu0 %v374
    %395 = vmatpush.msra.mxu0 %v373
    %396 = vmatmul.f32.gmra.mxu0 %v378
    %v397 = vpop.f32.mrf.mxu0
    %v398 = vadd.f32 0.0, %v397
    %399 = vdwg.mxu0
    %v400 = vadd.f32 %v372, %v398
    %v401 = vxor.u32 %v400, 2147483648
    %v402 = vmul.f32 %v401, 1.442695
    %v403 = vpow.pop %v402
    %v404 = vadd.f32 %v403, 1.0
    %v405 = vrcp.pop %v404
    %v406 = vmul.f32 %v404, %v405
    %v407 = vsub.f32 1.0, %v406
    %v408 = vmul.f32 %v405, %v407
    %v409 = vadd.f32 %v405, %v408
    %vm410 = vweird.f32 %v404
    %vm411 = vweird.f32 %v405
    %vm412 = vmor %vm410, %vm411
    %v413 = vsel %vm412, %v405, %v409
    %v414 = vand.u32 2147483647, %v404
    %vm415 = vcmp.eq.f32.partialorder %v414, 8.507059e+37
    %v416 = vand.u32 %v404, 2147483648
    %v417 = vor.u32 1.1754944e-38, %v416
    %v418 = vsel %vm415, %v417, %v413
    %v419 = vmul.f32 1.0, %v418
    %v420 = vtanh.pop %v400
    %422 = vrot.lane.b32.xlu0 %v370, 32
    %v423 = vpop.permute.xlu0 %422
    %v425 = vmul.f32 %v419, %v423
    %427 = vrot.lane.b32.xlu0 %v420, 64
    %v428 = vpop.permute.xlu0 %427
    %v430 = vmul.f32 %v419, %v428
    %432 = vrot.lane.b32.xlu0 %v430, 32
    %v433 = vpop.permute.xlu0 %432
    %v435 = vadd.f32 %v425, %v433
    %v436 = vtanh.pop %v435
    %438 = vrot.lane.b32.xlu0 %v436, 64
    %v439 = vpop.permute.xlu0 %438
    %v441 = vmul.f32 %v419, %v439
    %443 = vrot.lane.b32.xlu0 %v441, 32
    %v444 = vpop.permute.xlu0 %443
    %446 = vst.msk [vmem:[#allocation4] sm:$0xff] %vm40, %v444
    %448 = vrot.lane.b32.xlu0 %v435, 96
    %v449 = vpop.permute.xlu0 %448
    %451 = vst.msk [vmem:[#allocation5] sm:$0xff] %vm40, %v449
    %s452 = scalar_lea.vmem [#allocation3], 24
    %453 = vst.msk [vmem:[%s452] sm:$0xff] %vm40, %v444
    %v454 = vld [vmem:[#allocation4] sm:$0xff]
    %v455 = vld [vmem:[#allocation5] sm:$0xff]
    %s456 = scalar_lea.vmem [#allocation2], 32
    %v457 = vld [vmem:[%s456] sm:$0xff]
    %v458 = vld [vmem:[%s2] sm:$0xff]
    %v459 = vld [vmem:[%s2 + $0x8] sm:$0xff]
    %v460 = vld [vmem:[%s2 + $0x10] sm:$0xff]
    %v461 = vld [vmem:[%s2 + $0x18] sm:$0xff]
    %v463 = vsel %vm40, %v454, 0
    %465 = vmatpush.msra.mxu0 0.0
    %466 = vmatpush.msra.mxu0 0.0
    %467 = vmatpush.msra.mxu0 0.0
    %468 = vmatpush.msra.mxu0 0.0
    %469 = vmatpush.msra.mxu0 0.0
    %470 = vmatpush.msra.mxu0 0.0
    %471 = vmatpush.msra.mxu0 0.0
    %472 = vmatpush.msra.mxu0 0.0
    %473 = vmatpush.msra.mxu0 0.0
    %474 = vmatpush.msra.mxu0 0.0
    %475 = vmatpush.msra.mxu0 0.0
    %476 = vmatpush.msra.mxu0 0.0
    %477 = vmatpush.msra.mxu0 %v461
    %478 = vmatpush.msra.mxu0 %v460
    %479 = vmatpush.msra.mxu0 %v459
    %480 = vmatpush.msra.mxu0 %v458
    %481 = vmatmul.f32.gmra.mxu0 %v463
    %v482 = vpop.f32.mrf.mxu0
    %v483 = vadd.f32 0.0, %v482
    %484 = vdwg.mxu0
    %v485 = vadd.f32 %v457, %v483
    %v486 = vxor.u32 %v485, 2147483648
    %v487 = vmul.f32 %v486, 1.442695
    %v488 = vpow.pop %v487
    %v489 = vadd.f32 %v488, 1.0
    %v490 = vrcp.pop %v489
    %v491 = vmul.f32 %v489, %v490
    %v492 = vsub.f32 1.0, %v491
    %v493 = vmul.f32 %v490, %v492
    %v494 = vadd.f32 %v490, %v493
    %vm495 = vweird.f32 %v489
    %vm496 = vweird.f32 %v490
    %vm497 = vmor %vm495, %vm496
    %v498 = vsel %vm497, %v490, %v494
    %v499 = vand.u32 2147483647, %v489
    %vm500 = vcmp.eq.f32.partialorder %v499, 8.507059e+37
    %v501 = vand.u32 %v489, 2147483648
    %v502 = vor.u32 1.1754944e-38, %v501
    %v503 = vsel %vm500, %v502, %v498
    %v504 = vmul.f32 1.0, %v503
    %v505 = vtanh.pop %v485
    %507 = vrot.lane.b32.xlu0 %v455, 32
    %v508 = vpop.permute.xlu0 %507
    %v510 = vmul.f32 %v504, %v508
    %512 = vrot.lane.b32.xlu0 %v505, 64
    %v513 = vpop.permute.xlu0 %512
    %v515 = vmul.f32 %v504, %v513
    %517 = vrot.lane.b32.xlu0 %v515, 32
    %v518 = vpop.permute.xlu0 %517
    %v520 = vadd.f32 %v510, %v518
    %v521 = vtanh.pop %v520
    %523 = vrot.lane.b32.xlu0 %v521, 64
    %v524 = vpop.permute.xlu0 %523
    %v526 = vmul.f32 %v504, %v524
    %528 = vrot.lane.b32.xlu0 %v526, 32
    %v529 = vpop.permute.xlu0 %528
    %531 = vst.msk [vmem:[#allocation4] sm:$0xff] %vm40, %v529
    %533 = vrot.lane.b32.xlu0 %v520, 96
    %v534 = vpop.permute.xlu0 %533
    %536 = vst.msk [vmem:[#allocation5] sm:$0xff] %vm40, %v534
    %s537 = scalar_lea.vmem [#allocation3], 32
    %538 = vst.msk [vmem:[%s537] sm:$0xff] %vm40, %v529
    %v539 = vld [vmem:[#allocation4] sm:$0xff]
    %v540 = vld [vmem:[#allocation5] sm:$0xff]
    %s541 = scalar_lea.vmem [#allocation2], 40
    %v542 = vld [vmem:[%s541] sm:$0xff]
    %v543 = vld [vmem:[%s2] sm:$0xff]
    %v544 = vld [vmem:[%s2 + $0x8] sm:$0xff]
    %v545 = vld [vmem:[%s2 + $0x10] sm:$0xff]
    %v546 = vld [vmem:[%s2 + $0x18] sm:$0xff]
    %v548 = vsel %vm40, %v539, 0
    %550 = vmatpush.msra.mxu0 0.0
    %551 = vmatpush.msra.mxu0 0.0
    %552 = vmatpush.msra.mxu0 0.0
    %553 = vmatpush.msra.mxu0 0.0
    %554 = vmatpush.msra.mxu0 0.0
    %555 = vmatpush.msra.mxu0 0.0
    %556 = vmatpush.msra.mxu0 0.0
    %557 = vmatpush.msra.mxu0 0.0
    %558 = vmatpush.msra.mxu0 0.0
    %559 = vmatpush.msra.mxu0 0.0
    %560 = vmatpush.msra.mxu0 0.0
    %561 = vmatpush.msra.mxu0 0.0
    %562 = vmatpush.msra.mxu0 %v546
    %563 = vmatpush.msra.mxu0 %v545
    %564 = vmatpush.msra.mxu0 %v544
    %565 = vmatpush.msra.mxu0 %v543
    %566 = vmatmul.f32.gmra.mxu0 %v548
    %v567 = vpop.f32.mrf.mxu0
    %v568 = vadd.f32 0.0, %v567
    %569 = vdwg.mxu0
    %v570 = vadd.f32 %v542, %v568
    %v571 = vxor.u32 %v570, 2147483648
    %v572 = vmul.f32 %v571, 1.442695
    %v573 = vpow.pop %v572
    %v574 = vadd.f32 %v573, 1.0
    %v575 = vrcp.pop %v574
    %v576 = vmul.f32 %v574, %v575
    %v577 = vsub.f32 1.0, %v576
    %v578 = vmul.f32 %v575, %v577
    %v579 = vadd.f32 %v575, %v578
    %vm580 = vweird.f32 %v574
    %vm581 = vweird.f32 %v575
    %vm582 = vmor %vm580, %vm581
    %v583 = vsel %vm582, %v575, %v579
    %v584 = vand.u32 2147483647, %v574
    %vm585 = vcmp.eq.f32.partialorder %v584, 8.507059e+37
    %v586 = vand.u32 %v574, 2147483648
    %v587 = vor.u32 1.1754944e-38, %v586
    %v588 = vsel %vm585, %v587, %v583
    %v589 = vmul.f32 1.0, %v588
    %v590 = vtanh.pop %v570
    %592 = vrot.lane.b32.xlu0 %v540, 32
    %v593 = vpop.permute.xlu0 %592
    %v595 = vmul.f32 %v589, %v593
    %597 = vrot.lane.b32.xlu0 %v590, 64
    %v598 = vpop.permute.xlu0 %597
    %v600 = vmul.f32 %v589, %v598
    %602 = vrot.lane.b32.xlu0 %v600, 32
    %v603 = vpop.permute.xlu0 %602
    %v605 = vadd.f32 %v595, %v603
    %v606 = vtanh.pop %v605
    %608 = vrot.lane.b32.xlu0 %v606, 64
    %v609 = vpop.permute.xlu0 %608
    %v611 = vmul.f32 %v589, %v609
    %613 = vrot.lane.b32.xlu0 %v611, 32
    %v614 = vpop.permute.xlu0 %613
    %616 = vst.msk [vmem:[#allocation4] sm:$0xff] %vm40, %v614
    %618 = vrot.lane.b32.xlu0 %v605, 96
    %v619 = vpop.permute.xlu0 %618
    %621 = vst.msk [vmem:[#allocation5] sm:$0xff] %vm40, %v619
    %s622 = scalar_lea.vmem [#allocation3], 40
    %623 = vst.msk [vmem:[%s622] sm:$0xff] %vm40, %v614
    %v624 = vld [vmem:[#allocation4] sm:$0xff]
    %v625 = vld [vmem:[#allocation5] sm:$0xff]
    %s626 = scalar_lea.vmem [#allocation2], 48
    %v627 = vld [vmem:[%s626] sm:$0xff]
    %v628 = vld [vmem:[%s2] sm:$0xff]
    %v629 = vld [vmem:[%s2 + $0x8] sm:$0xff]
    %v630 = vld [vmem:[%s2 + $0x10] sm:$0xff]
    %v631 = vld [vmem:[%s2 + $0x18] sm:$0xff]
    %v633 = vsel %vm40, %v624, 0
    %635 = vmatpush.msra.mxu0 0.0
    %636 = vmatpush.msra.mxu0 0.0
    %637 = vmatpush.msra.mxu0 0.0
    %638 = vmatpush.msra.mxu0 0.0
    %639 = vmatpush.msra.mxu0 0.0
    %640 = vmatpush.msra.mxu0 0.0
    %641 = vmatpush.msra.mxu0 0.0
    %642 = vmatpush.msra.mxu0 0.0
    %643 = vmatpush.msra.mxu0 0.0
    %644 = vmatpush.msra.mxu0 0.0
    %645 = vmatpush.msra.mxu0 0.0
    %646 = vmatpush.msra.mxu0 0.0
    %647 = vmatpush.msra.mxu0 %v631
    %648 = vmatpush.msra.mxu0 %v630
    %649 = vmatpush.msra.mxu0 %v629
    %650 = vmatpush.msra.mxu0 %v628
    %651 = vmatmul.f32.gmra.mxu0 %v633
    %v652 = vpop.f32.mrf.mxu0
    %v653 = vadd.f32 0.0, %v652
    %654 = vdwg.mxu0
    %v655 = vadd.f32 %v627, %v653
    %v656 = vxor.u32 %v655, 2147483648
    %v657 = vmul.f32 %v656, 1.442695
    %v658 = vpow.pop %v657
    %v659 = vadd.f32 %v658, 1.0
    %v660 = vrcp.pop %v659
    %v661 = vmul.f32 %v659, %v660
    %v662 = vsub.f32 1.0, %v661
    %v663 = vmul.f32 %v660, %v662
    %v664 = vadd.f32 %v660, %v663
    %vm665 = vweird.f32 %v659
    %vm666 = vweird.f32 %v660
    %vm667 = vmor %vm665, %vm666
    %v668 = vsel %vm667, %v660, %v664
    %v669 = vand.u32 2147483647, %v659
    %vm670 = vcmp.eq.f32.partialorder %v669, 8.507059e+37
    %v671 = vand.u32 %v659, 2147483648
    %v672 = vor.u32 1.1754944e-38, %v671
    %v673 = vsel %vm670, %v672, %v668
    %v674 = vmul.f32 1.0, %v673
    %v675 = vtanh.pop %v655
    %677 = vrot.lane.b32.xlu0 %v625, 32
    %v678 = vpop.permute.xlu0 %677
    %v680 = vmul.f32 %v674, %v678
    %682 = vrot.lane.b32.xlu0 %v675, 64
    %v683 = vpop.permute.xlu0 %682
    %v685 = vmul.f32 %v674, %v683
    %687 = vrot.lane.b32.xlu0 %v685, 32
    %v688 = vpop.permute.xlu0 %687
    %v690 = vadd.f32 %v680, %v688
    %v691 = vtanh.pop %v690
    %693 = vrot.lane.b32.xlu0 %v691, 64
    %v694 = vpop.permute.xlu0 %693
    %v696 = vmul.f32 %v674, %v694
    %698 = vrot.lane.b32.xlu0 %v696, 32
    %v699 = vpop.permute.xlu0 %698
    %701 = vst.msk [vmem:[#allocation4] sm:$0xff] %vm40, %v699
    %703 = vrot.lane.b32.xlu0 %v690, 96
    %v704 = vpop.permute.xlu0 %703
    %706 = vst.msk [vmem:[#allocation5] sm:$0xff] %vm40, %v704
    %s707 = scalar_lea.vmem [#allocation3], 48
    %708 = vst.msk [vmem:[%s707] sm:$0xff] %vm40, %v699
    %v709 = vld [vmem:[#allocation4] sm:$0xff]
    %v710 = vld [vmem:[#allocation5] sm:$0xff]
    %s711 = scalar_lea.vmem [#allocation2], 56
    %v712 = vld [vmem:[%s711] sm:$0xff]
    %v713 = vld [vmem:[%s2] sm:$0xff]
    %v714 = vld [vmem:[%s2 + $0x8] sm:$0xff]
    %v715 = vld [vmem:[%s2 + $0x10] sm:$0xff]
    %v716 = vld [vmem:[%s2 + $0x18] sm:$0xff]
    %v718 = vsel %vm40, %v709, 0
    %720 = vmatpush.msra.mxu0 0.0
    %721 = vmatpush.msra.mxu0 0.0
    %722 = vmatpush.msra.mxu0 0.0
    %723 = vmatpush.msra.mxu0 0.0
    %724 = vmatpush.msra.mxu0 0.0
    %725 = vmatpush.msra.mxu0 0.0
    %726 = vmatpush.msra.mxu0 0.0
    %727 = vmatpush.msra.mxu0 0.0
    %728 = vmatpush.msra.mxu0 0.0
    %729 = vmatpush.msra.mxu0 0.0
    %730 = vmatpush.msra.mxu0 0.0
    %731 = vmatpush.msra.mxu0 0.0
    %732 = vmatpush.msra.mxu0 %v716
    %733 = vmatpush.msra.mxu0 %v715
    %734 = vmatpush.msra.mxu0 %v714
    %735 = vmatpush.msra.mxu0 %v713
    %736 = vmatmul.f32.gmra.mxu0 %v718
    %v737 = vpop.f32.mrf.mxu0
    %v738 = vadd.f32 0.0, %v737
    %739 = vdwg.mxu0
    %v740 = vadd.f32 %v712, %v738
    %v741 = vxor.u32 %v740, 2147483648
    %v742 = vmul.f32 %v741, 1.442695
    %v743 = vpow.pop %v742
    %v744 = vadd.f32 %v743, 1.0
    %v745 = vrcp.pop %v744
    %v746 = vmul.f32 %v744, %v745
    %v747 = vsub.f32 1.0, %v746
    %v748 = vmul.f32 %v745, %v747
    %v749 = vadd.f32 %v745, %v748
    %vm750 = vweird.f32 %v744
    %vm751 = vweird.f32 %v745
    %vm752 = vmor %vm750, %vm751
    %v753 = vsel %vm752, %v745, %v749
    %v754 = vand.u32 2147483647, %v744
    %vm755 = vcmp.eq.f32.partialorder %v754, 8.507059e+37
    %v756 = vand.u32 %v744, 2147483648
    %v757 = vor.u32 1.1754944e-38, %v756
    %v758 = vsel %vm755, %v757, %v753
    %v759 = vmul.f32 1.0, %v758
    %v760 = vtanh.pop %v740
    %762 = vrot.lane.b32.xlu0 %v710, 32
    %v763 = vpop.permute.xlu0 %762
    %v765 = vmul.f32 %v759, %v763
    %767 = vrot.lane.b32.xlu0 %v760, 64
    %v768 = vpop.permute.xlu0 %767
    %v770 = vmul.f32 %v759, %v768
    %772 = vrot.lane.b32.xlu0 %v770, 32
    %v773 = vpop.permute.xlu0 %772
    %v775 = vadd.f32 %v765, %v773
    %v776 = vtanh.pop %v775
    %778 = vrot.lane.b32.xlu0 %v776, 64
    %v779 = vpop.permute.xlu0 %778
    %v781 = vmul.f32 %v759, %v779
    %783 = vrot.lane.b32.xlu0 %v781, 32
    %v784 = vpop.permute.xlu0 %783
    %786 = vst.msk [vmem:[#allocation4] sm:$0xff] %vm40, %v784
    %788 = vrot.lane.b32.xlu0 %v775, 96
    %v789 = vpop.permute.xlu0 %788
    %791 = vst.msk [vmem:[#allocation5] sm:$0xff] %vm40, %v789
    %s792 = scalar_lea.vmem [#allocation3], 56
    %793 = vst.msk [vmem:[%s792] sm:$0xff] %vm40, %v784
    %v794 = vld [vmem:[#allocation3] sm:$0xff]
    %v795 = vld [vmem:[#allocation3 + $0x8] sm:$0xff]
    %v796 = vld [vmem:[#allocation3 + $0x10] sm:$0xff]
    %v797 = vld [vmem:[#allocation3 + $0x18] sm:$0xff]
    %v798 = vld [vmem:[#allocation3 + $0x20] sm:$0xff]
    %v799 = vld [vmem:[#allocation3 + $0x28] sm:$0xff]
    %v800 = vld [vmem:[#allocation3 + $0x30] sm:$0xff]
    %v801 = vld [vmem:[#allocation3 + $0x38] sm:$0xff]
    %v802 = vld [vmem:[%s4] sm:$0xff]
    %v803 = vld [vmem:[%s4 + $0x8] sm:$0xff]
    %v804 = vld [vmem:[%s4 + $0x10] sm:$0xff]
    %v805 = vld [vmem:[%s4 + $0x18] sm:$0xff]
    %v806 = vld [vmem:[%s5] sm:$0x1]
    %v808 = vperm.slane %v806, 0
    %v811 = vsel %vm40, %v794, 0
    %v814 = vsel %vm40, %v795, 0
    %v817 = vsel %vm40, %v796, 0
    %v820 = vsel %vm40, %v797, 0
    %v823 = vsel %vm40, %v798, 0
    %v826 = vsel %vm40, %v799, 0
    %v829 = vsel %vm40, %v800, 0
    %v832 = vsel %vm40, %v801, 0
    %834 = vmatpush.msra.mxu0 0.0
    %835 = vmatpush.msra.mxu0 0.0
    %836 = vmatpush.msra.mxu0 0.0
    %837 = vmatpush.msra.mxu0 0.0
    %838 = vmatpush.msra.mxu0 0.0
    %839 = vmatpush.msra.mxu0 0.0
    %840 = vmatpush.msra.mxu0 0.0
    %841 = vmatpush.msra.mxu0 0.0
    %842 = vmatpush.msra.mxu0 0.0
    %843 = vmatpush.msra.mxu0 0.0
    %844 = vmatpush.msra.mxu0 0.0
    %845 = vmatpush.msra.mxu0 0.0
    %846 = vmatpush.msra.mxu0 %v805
    %847 = vmatpush.msra.mxu0 %v804
    %848 = vmatpush.msra.mxu0 %v803
    %849 = vmatpush.msra.mxu0 %v802
    %850 = vmatmul.f32.gmra.mxu0 %v811
    %v851 = vpop.f32.mrf.mxu0
    %v852 = vadd.f32 %v808, %v851
    %853 = vmatmul.f32.gmra.mxu0 %v814
    %v854 = vpop.f32.mrf.mxu0
    %v855 = vadd.f32 %v808, %v854
    %856 = vmatmul.f32.gmra.mxu0 %v817
    %v857 = vpop.f32.mrf.mxu0
    %v858 = vadd.f32 %v808, %v857
    %859 = vmatmul.f32.gmra.mxu0 %v820
    %v860 = vpop.f32.mrf.mxu0
    %v861 = vadd.f32 %v808, %v860
    %862 = vmatmul.f32.gmra.mxu0 %v823
    %v863 = vpop.f32.mrf.mxu0
    %v864 = vadd.f32 %v808, %v863
    %865 = vmatmul.f32.gmra.mxu0 %v826
    %v866 = vpop.f32.mrf.mxu0
    %v867 = vadd.f32 %v808, %v866
    %868 = vmatmul.f32.gmra.mxu0 %v829
    %v869 = vpop.f32.mrf.mxu0
    %v870 = vadd.f32 %v808, %v869
    %871 = vmatmul.f32.gmra.mxu0 %v832
    %v872 = vpop.f32.mrf.mxu0
    %v873 = vadd.f32 %v808, %v872
    %874 = vdwg.mxu0
    %875 = vst [vmem:[#allocation6] sm:$0xff] %v852
    %876 = vst [vmem:[#allocation6 + $0x8] sm:$0xff] %v855
    %877 = vst [vmem:[#allocation6 + $0x10] sm:$0xff] %v858
    %878 = vst [vmem:[#allocation6 + $0x18] sm:$0xff] %v861
    %879 = vst [vmem:[#allocation6 + $0x20] sm:$0xff] %v864
    %880 = vst [vmem:[#allocation6 + $0x28] sm:$0xff] %v867
    %881 = vst [vmem:[#allocation6 + $0x30] sm:$0xff] %v870
    %882 = vst [vmem:[#allocation6 + $0x38] sm:$0xff] %v873
    // Predicated region
    $region26: #{tpu_custom_call.1} parent=1 // pred_check
      _
    $region27: #{tpu_custom_call.1} parent=1 // pred_check_branch
      %884 = sbr.rel (0) target = $region29
    $region28: #{tpu_custom_call.1} parent=1 // pred_region
      %886 = vsyncadd [#allocation7], 0
      %s887 = sshll.u32 [#allocation6], 4
      %s888 = int_to_ptr.vmem [resolvable:$true] %s887
      %s889 = sshll.u32 %s6, 4
      %s890 = int_to_ptr.hbm [resolvable:$true] %s889
      %895 = dma.vmem_to_hbm [thread:$0]  %s888, 1024, %s890, [#allocation7], 128, 128, 8
    $region29: #{tpu_custom_call.1} parent=1 // pred_fallthru
      _
    // Predicated region
    $region30: #{tpu_custom_call.1} parent=1 // pred_check
      _
    $region31: #{tpu_custom_call.1} parent=1 // pred_check_branch
      %897 = sbr.rel (0) target = $region33
    $region32: #{tpu_custom_call.1} parent=1 // pred_region
      %899 = dma.done [#allocation7], 1024
    $region33: #{tpu_custom_call.1} parent=1 // pred_fallthru
      _
    %900 = vsyncpa [#allocation7], 1

</llo_original>
